<compile_context>
chip_gen: v5e
topology: v5e:2x2
jax: 0.10.0
libtpu: 0.0.40
codegen_flags: <defaults>
</compile_context>

<pallas_src>
import functools
import math

import jax
import jax.numpy as jnp
from jax.experimental import pallas as pl
from jax.experimental.pallas import tpu as pltpu

LAYER_NORM_EPS = 1e-12

# Contract the last dim of both operands: x[.., H_in] @ W[H_out, H_in]^T  (PyTorch Linear layout).
_DN_NT = (((1,), (1,)), ((), ()))


def _round_up(x, m):
    return (x + m - 1) // m * m


def _pick_vmem_limit(working_set_bytes, headroom=1.5):
    """Right-sized scoped-VMEM request: estimate*headroom, >=32MiB, <=3/4 of physical VMEM."""
    want = int(working_set_bytes * headroom)
    try:
        phys = int(pltpu.get_tpu_info().vmem_capacity_bytes)
    except Exception:  # conservative fallback (v7x physical VMEM)
        phys = 64 * 1024 * 1024
    cap = (phys * 3) // 4
    return int(min(max(want, 32 * 1024 * 1024), cap))


def _attention_working_set_bytes(tile, Sk, H, NH, in_bytes, cd_bytes, probs_bytes, has_mask):
    b = 2 * in_bytes * (tile * H + 2 * Sk * H)        # q/k/v blocks (double-buffered)
    if has_mask:
        b += 2 * 4 * Sk                               # compact mask block
    b += 2 * (4 * H * H * cd_bytes + 6 * H * 4)       # 4 (H,H) weights + 6 (1,H) f32 params
    b += 2 * in_bytes * tile * H                      # attention_output block
    b += 2 * probs_bytes * NH * tile * Sk             # probs block
    b += 4 * tile * H                                 # ctx scratch (f32)
    b += 4 * (2 * tile * H + 2 * Sk * H + 2 * tile * Sk)  # f32 in-kernel intermediates (rough)
    return b


def _compact_mask(attention_mask, B, Sk):
    """Accept the standard BERT additive mask (broadcastable over heads and query positions)
    and return it as a compact (B, 1, Sk) f32 array, or None."""
    if attention_mask is None:
        return None
    m = jnp.asarray(attention_mask, jnp.float32)
    if m.ndim == 4 and m.shape[1] == 1 and m.shape[2] == 1:
        m = m[:, 0, 0, :]
    elif m.ndim == 3 and m.shape[1] == 1:
        m = m[:, 0, :]
    elif m.ndim == 2:
        pass
    elif m.ndim == 1:
        m = m[None, :]
    else:
        # TODO(synk): general per-head / per-query additive masks would need a (1,NH,tq,Sk) block.
        raise NotImplementedError("only masks broadcastable to (B, 1, 1, Sk) are supported")
    m = jnp.broadcast_to(m, (B, Sk))
    return m.reshape(B, 1, Sk)


# ----------------------------------------------------------------------------
# Fused kernel: QKV projections + per-head attention + dense + residual + LayerNorm
# ----------------------------------------------------------------------------
def _bert_cross_attention_kernel(*refs, num_heads, head_dim, eps, has_mask, compute_dtype):
    if has_mask:
        (q_ref, k_ref, v_ref, mask_ref,
         wq_ref, bq_ref, wk_ref, bk_ref, wv_ref, bv_ref,
         wo_ref, bo_ref, g_ref, beta_ref,
         out_ref, probs_ref, ctx_sc) = refs
    else:
        (q_ref, k_ref, v_ref,
         wq_ref, bq_ref, wk_ref, bk_ref, wv_ref, bv_ref,
         wo_ref, bo_ref, g_ref, beta_ref,
         out_ref, probs_ref, ctx_sc) = refs
        mask_ref = None

    cd = compute_dtype
    xq = q_ref[0]            # (tq, H) — also the residual for the fused BertSelfOutput
    xk = k_ref[0]            # (Sk, H)
    xv = v_ref[0]            # (Sk, H)

    # Projections: operands in compute dtype on the MXU, f32 accumulation, f32 bias add.
    q = jax.lax.dot_general(xq.astype(cd), wq_ref[...], _DN_NT,
                            preferred_element_type=jnp.float32) + bq_ref[...]
    k = jax.lax.dot_general(xk.astype(cd), wk_ref[...], _DN_NT,
                            preferred_element_type=jnp.float32) + bk_ref[...]
    v = jax.lax.dot_general(xv.astype(cd), wv_ref[...], _DN_NT,
                            preferred_element_type=jnp.float32) + bv_ref[...]

    inv_sqrt_d = 1.0 / math.sqrt(head_dim)
    for h in range(num_heads):   # small static head count -> fully unrolled
        sl = slice(h * head_dim, (h + 1) * head_dim)
        qh = q[:, sl].astype(cd)             # (tq, D)
        kh = k[:, sl].astype(cd)             # (Sk, D)
        vh = v[:, sl].astype(cd)             # (Sk, D)

        s = jax.lax.dot_general(qh, kh, _DN_NT,
                                preferred_element_type=jnp.float32)   # (tq, Sk)
        s = s * inv_sqrt_d
        if mask_ref is not None:
            s = s + mask_ref[0]              # (1, Sk) broadcast over query rows & heads

        # stable softmax in f32; 1/sum on the EUP slot
        s = s - jnp.max(s, axis=-1, keepdims=True)
        e = jnp.exp(s)
        p = e * pl.reciprocal(jnp.sum(e, axis=-1, keepdims=True), approx=True)
        # TODO(synk): training-mode attention-prob dropout (pltpu.prng_*) not wired in; eval = identity.

        probs_ref[0, h] = p.astype(probs_ref.dtype)
        ctx_sc[:, sl] = jnp.dot(p.astype(cd), vh,
                                preferred_element_type=jnp.float32)   # (tq, D)

    # Fused BertSelfOutput: dense -> dropout[eval] -> + residual(query) -> LayerNorm (all f32 epilogue).
    ho = jax.lax.dot_general(ctx_sc[...].astype(cd), wo_ref[...], _DN_NT,
                             preferred_element_type=jnp.float32) + bo_ref[...]
    # TODO(synk): training-mode hidden dropout not wired in; eval = identity.
    ho = ho + xq.astype(jnp.float32)
    mean = jnp.mean(ho, axis=-1, keepdims=True)
    cen = ho - mean
    var = jnp.mean(cen * cen, axis=-1, keepdims=True)
    y = cen * jax.lax.rsqrt(var + eps)
    y = y * g_ref[...] + beta_ref[...]
    out_ref[0] = y.astype(out_ref.dtype)


def bert_cross_attention(query, key, value, attention_mask, q_attention_mask,
                         wq, bq, wk, bk, wv, bv, wo, bo, gamma, beta, *,
                         num_heads, layer_norm_eps=LAYER_NORM_EPS,
                         q_tile=256, compute_dtype=None, probs_dtype=None,
                         vmem_limit_bytes=None):
    """query: [B, Sq, H]; key/value: [B, Sk, H]; attention_mask broadcastable to [B, 1, 1, Sk]
    (standard BERT additive mask) or None. Weights in PyTorch nn.Linear layout [out, in].
    Returns (attention_output [B,Sq,H], attention_probs [B,NH,Sq,Sk])."""
    del q_attention_mask  # unused by the reference forward; kept for signature parity
    B, Sq, H = query.shape
    Sk = key.shape[1]
    assert H % num_heads == 0
    D = H // num_heads

    cd = jnp.dtype(compute_dtype) if compute_dtype is not None else jnp.dtype(query.dtype)
    pd = jnp.dtype(probs_dtype) if probs_dtype is not None else jnp.dtype(query.dtype)

    mask = _compact_mask(attention_mask, B, Sk)
    has_mask = mask is not None

    # Sq tiling (>=128 recommended for MXU utilization; ragged Sq handled by zero padding).
    tile = max(8, min(_round_up(q_tile, 8), _round_up(Sq, 8)))
    Sq_pad = _round_up(Sq, tile)
    q_in = query if Sq_pad == Sq else jnp.pad(query, ((0, 0), (0, Sq_pad - Sq), (0, 0)))
    n_tq = Sq_pad // tile

    f32 = jnp.float32
    params = [
        wq.astype(cd), bq.reshape(1, H).astype(f32),
        wk.astype(cd), bk.reshape(1, H).astype(f32),
        wv.astype(cd), bv.reshape(1, H).astype(f32),
        wo.astype(cd), bo.reshape(1, H).astype(f32),
        gamma.reshape(1, H).astype(f32), beta.reshape(1, H).astype(f32),
    ]
    w_spec = pl.BlockSpec((H, H), lambda b, i: (0, 0))   # constant index -> fetched once
    p_spec = pl.BlockSpec((1, H), lambda b, i: (0, 0))
    param_specs = [w_spec, p_spec, w_spec, p_spec, w_spec, p_spec, w_spec, p_spec, p_spec, p_spec]

    inputs = [q_in, key, value]
    in_specs = [
        pl.BlockSpec((1, tile, H), lambda b, i: (b, i, 0)),    # query tile (also residual)
        pl.BlockSpec((1, Sk, H), lambda b, i: (b, 0, 0)),      # key   (constant over Sq tiles)
        pl.BlockSpec((1, Sk, H), lambda b, i: (b, 0, 0)),      # value (constant over Sq tiles)
    ]
    if has_mask:
        inputs.append(mask)
        in_specs.append(pl.BlockSpec((1, 1, Sk), lambda b, i: (b, 0, 0)))  # compact additive mask
    inputs += params
    in_specs += param_specs

    out_specs = [
        pl.BlockSpec((1, tile, H), lambda b, i: (b, i, 0)),
        pl.BlockSpec((1, num_heads, tile, Sk), lambda b, i: (b, 0, i, 0)),
    ]
    out_shape = (jax.ShapeDtypeStruct((B, Sq_pad, H), query.dtype),
                 jax.ShapeDtypeStruct((B, num_heads, Sq_pad, Sk), pd))

    if vmem_limit_bytes is None:
        est = _attention_working_set_bytes(
            tile, Sk, H, num_heads,
            jnp.dtype(query.dtype).itemsize, cd.itemsize, pd.itemsize, has_mask)
        vmem_limit_bytes = _pick_vmem_limit(est)

    kernel = functools.partial(_bert_cross_attention_kernel,
                               num_heads=num_heads, head_dim=D, eps=layer_norm_eps,
                               has_mask=has_mask, compute_dtype=cd)

    out, probs = pl.pallas_call(
        kernel,
        out_shape=out_shape,
        grid_spec=pltpu.PrefetchScalarGridSpec(
            num_scalar_prefetch=0,
            grid=(B, n_tq),
            in_specs=in_specs,
            out_specs=out_specs,
            scratch_shapes=[pltpu.VMEM((tile, H), jnp.float32)],  # per-head ctx accumulator
        ),
        compiler_params=pltpu.CompilerParams(
            dimension_semantics=("parallel", "parallel"),
            vmem_limit_bytes=int(vmem_limit_bytes)),
    )(*inputs)

    if Sq_pad != Sq:
        out = out[:, :Sq, :]
        probs = probs[:, :, :Sq, :]
    return out, probs


# ----------------------------------------------------------------------------
# Pure-JAX reference
# ----------------------------------------------------------------------------
def bert_cross_attention_ref(query, key, value, attention_mask,
                             wq, bq, wk, bk, wv, bv, wo, bo, gamma, beta, *,
                             num_heads, layer_norm_eps=LAYER_NORM_EPS):
    B, Sq, H = query.shape
    Sk = key.shape[1]
    D = H // num_heads

    def lin(x, w, b):
        return jnp.einsum('bsh,oh->bso', x, w) + b

    q = lin(query, wq, bq).reshape(B, Sq, num_heads, D).transpose(0, 2, 1, 3)
    k = lin(key, wk, bk).reshape(B, Sk, num_heads, D).transpose(0, 2, 1, 3)
    v = lin(value, wv, bv).reshape(B, Sk, num_heads, D).transpose(0, 2, 1, 3)

    scores = jnp.einsum('bnqd,bnkd->bnqk', q, k) / math.sqrt(D)
    if attention_mask is not None:
        scores = scores + attention_mask
    probs = jax.nn.softmax(scores, axis=-1)
    ctx = jnp.einsum('bnqk,bnkd->bnqd', probs, v)
    ctx = ctx.transpose(0, 2, 1, 3).reshape(B, Sq, H)

    h = jnp.einsum('bsh,oh->bso', ctx, wo) + bo + query
    mean = jnp.mean(h, axis=-1, keepdims=True)
    var = jnp.mean((h - mean) ** 2, axis=-1, keepdims=True)
    out = (h - mean) * jax.lax.rsqrt(var + layer_norm_eps) * gamma + beta
    return out, probs


if __name__ == "__main__":
    B, Sq, Sk, H, NH = 2, 8, 8, 32, 4

    ks = jax.random.split(jax.random.PRNGKey(0), 11)
    query = jax.random.normal(ks[0], (B, Sq, H), dtype=jnp.float32)
    key_in = jax.random.normal(ks[1], (B, Sk, H), dtype=jnp.float32)
    value_in = jax.random.normal(ks[2], (B, Sk, H), dtype=jnp.float32)

    # Standard BERT additive mask [B, 1, 1, Sk]: 0 = keep, -10000 = masked.
    valid_len = jnp.array([Sk, Sk - 2])
    keep = (jnp.arange(Sk)[None, :] < valid_len[:, None]).astype(jnp.float32)
    attention_mask = ((1.0 - keep) * -10000.0).reshape(B, 1, 1, Sk)

    # Deterministic synthetic parameters (PyTorch nn.Linear layout [out, in]).
    scale = 0.05
    wq = jax.random.normal(ks[3], (H, H), dtype=jnp.float32) * scale
    bq = jax.random.normal(ks[4], (H,), dtype=jnp.float32) * scale
    wk = jax.random.normal(ks[5], (H, H), dtype=jnp.float32) * scale
    bk = jax.random.normal(ks[6], (H,), dtype=jnp.float32) * scale
    wv = jax.random.normal(ks[7], (H, H), dtype=jnp.float32) * scale
    bv = jax.random.normal(ks[8], (H,), dtype=jnp.float32) * scale
    wo = jax.random.normal(ks[9], (H, H), dtype=jnp.float32) * scale
    bo = jax.random.normal(ks[10], (H,), dtype=jnp.float32) * scale
    gamma = jnp.ones((H,), dtype=jnp.float32)   # LayerNorm weight
    beta = jnp.zeros((H,), dtype=jnp.float32)   # LayerNorm bias

    # 1) f32 compute path (default), with mask.
    out, probs = bert_cross_attention(
        query, key_in, value_in, attention_mask, None,
        wq, bq, wk, bk, wv, bv, wo, bo, gamma, beta, num_heads=NH)
    out = jax.block_until_ready(out)
    probs = jax.block_until_ready(probs)

    ref_out, ref_probs = bert_cross_attention_ref(
        query, key_in, value_in, attention_mask,
        wq, bq, wk, bk, wv, bv, wo, bo, gamma, beta, num_heads=NH)

    assert jnp.allclose(out, ref_out, atol=1e-3, rtol=1e-3), "attention_output mismatch (f32)"
    assert jnp.allclose(probs, ref_probs, atol=1e-3, rtol=1e-3), "attention_probs mismatch (f32)"

    # 2) no-mask code path (mask argument dropped entirely).
    out_nm, probs_nm = bert_cross_attention(
        query, key_in, value_in, None, None,
        wq, bq, wk, bk, wv, bv, wo, bo, gamma, beta, num_heads=NH)
    out_nm = jax.block_until_ready(out_nm)
    ref_out_nm, ref_probs_nm = bert_cross_attention_ref(
        query, key_in, value_in, None,
        wq, bq, wk, bk, wv, bv, wo, bo, gamma, beta, num_heads=NH)
    assert jnp.allclose(out_nm, ref_out_nm, atol=1e-3, rtol=1e-3), "attention_output mismatch (no mask)"
    assert jnp.allclose(probs_nm, ref_probs_nm, atol=1e-3, rtol=1e-3), "attention_probs mismatch (no mask)"

    # 3) bf16 MXU-operand path (v6e/v7x fast path), looser tolerance.
    out_bf, probs_bf = bert_cross_attention(
        query, key_in, value_in, attention_mask, None,
        wq, bq, wk, bk, wv, bv, wo, bo, gamma, beta,
        num_heads=NH, compute_dtype=jnp.bfloat16)
    out_bf = jax.block_until_ready(out_bf)
    assert jnp.allclose(out_bf, ref_out, atol=5e-2, rtol=5e-2), "attention_output mismatch (bf16 compute)"
    assert jnp.allclose(probs_bf, ref_probs, atol=5e-2, rtol=5e-2), "attention_probs mismatch (bf16 compute)"

    print("KERNEL_OK")
</pallas_src>

<mosaic_0001>
module attributes {stable_mosaic.version = 11 : i64} {
  func.func @_bert_cross_attention_kernel(%arg0: i32, %arg1: i32, %arg2: memref<1x8x32xf32, #tpu.memory_space<vmem>>, %arg3: memref<1x8x32xf32, #tpu.memory_space<vmem>>, %arg4: memref<1x8x32xf32, #tpu.memory_space<vmem>>, %arg5: memref<1x1x8xf32, #tpu.memory_space<vmem>>, %arg6: memref<32x32xf32, #tpu.memory_space<vmem>>, %arg7: memref<1x32xf32, #tpu.memory_space<vmem>>, %arg8: memref<32x32xf32, #tpu.memory_space<vmem>>, %arg9: memref<1x32xf32, #tpu.memory_space<vmem>>, %arg10: memref<32x32xf32, #tpu.memory_space<vmem>>, %arg11: memref<1x32xf32, #tpu.memory_space<vmem>>, %arg12: memref<32x32xf32, #tpu.memory_space<vmem>>, %arg13: memref<1x32xf32, #tpu.memory_space<vmem>>, %arg14: memref<1x32xf32, #tpu.memory_space<vmem>>, %arg15: memref<1x32xf32, #tpu.memory_space<vmem>>, %arg16: memref<1x8x32xf32, #tpu.memory_space<vmem>>, %arg17: memref<1x4x8x8xf32, #tpu.memory_space<vmem>>, %arg18: memref<8x32xf32, #tpu.memory_space<vmem>>) attributes {dimension_semantics = [#tpu.dimension_semantics<parallel>, #tpu.dimension_semantics<parallel>], iteration_bounds = array<i64: 2, 1>, scalar_prefetch = 0 : i64, scratch_operands = 1 : i64, tpu.core_type = #tpu.core_type<tc>, window_params = [{transform_indices = @transform_0, window_bounds = array<i64: 1, 8, 32>}, {transform_indices = @transform_1, window_bounds = array<i64: 1, 8, 32>}, {transform_indices = @transform_2, window_bounds = array<i64: 1, 8, 32>}, {transform_indices = @transform_3, window_bounds = array<i64: 1, 1, 8>}, {pipeline_mode = #tpu.pipeline_mode<synchronous>, transform_indices = @transform_4, window_bounds = array<i64: 32, 32>}, {pipeline_mode = #tpu.pipeline_mode<synchronous>, transform_indices = @transform_5, window_bounds = array<i64: 1, 32>}, {pipeline_mode = #tpu.pipeline_mode<synchronous>, transform_indices = @transform_6, window_bounds = array<i64: 32, 32>}, {pipeline_mode = #tpu.pipeline_mode<synchronous>, transform_indices = @transform_7, window_bounds = array<i64: 1, 32>}, {pipeline_mode = #tpu.pipeline_mode<synchronous>, transform_indices = @transform_8, window_bounds = array<i64: 32, 32>}, {pipeline_mode = #tpu.pipeline_mode<synchronous>, transform_indices = @transform_9, window_bounds = array<i64: 1, 32>}, {pipeline_mode = #tpu.pipeline_mode<synchronous>, transform_indices = @transform_10, window_bounds = array<i64: 32, 32>}, {pipeline_mode = #tpu.pipeline_mode<synchronous>, transform_indices = @transform_11, window_bounds = array<i64: 1, 32>}, {pipeline_mode = #tpu.pipeline_mode<synchronous>, transform_indices = @transform_12, window_bounds = array<i64: 1, 32>}, {pipeline_mode = #tpu.pipeline_mode<synchronous>, transform_indices = @transform_13, window_bounds = array<i64: 1, 32>}, {transform_indices = @transform_14, window_bounds = array<i64: 1, 8, 32>}, {transform_indices = @transform_15, window_bounds = array<i64: 1, 4, 8, 8>}]} {
    %c0 = arith.constant 0 : index
    %c0_0 = arith.constant 0 : index
    %c0_1 = arith.constant 0 : index
    %0 = vector.load %arg2[%c0, %c0_0, %c0_1] : memref<1x8x32xf32, #tpu.memory_space<vmem>>, vector<1x8x32xf32>
    %1 = vector.shape_cast %0 : vector<1x8x32xf32> to vector<8x32xf32>
    %c0_2 = arith.constant 0 : index
    %c0_3 = arith.constant 0 : index
    %c0_4 = arith.constant 0 : index
    %2 = vector.load %arg3[%c0_2, %c0_3, %c0_4] : memref<1x8x32xf32, #tpu.memory_space<vmem>>, vector<1x8x32xf32>
    %3 = vector.shape_cast %2 : vector<1x8x32xf32> to vector<8x32xf32>
    %c0_5 = arith.constant 0 : index
    %c0_6 = arith.constant 0 : index
    %c0_7 = arith.constant 0 : index
    %4 = vector.load %arg4[%c0_5, %c0_6, %c0_7] : memref<1x8x32xf32, #tpu.memory_space<vmem>>, vector<1x8x32xf32>
    %5 = vector.shape_cast %4 : vector<1x8x32xf32> to vector<8x32xf32>
    %c0_8 = arith.constant 0 : index
    %c0_9 = arith.constant 0 : index
    %6 = vector.load %arg6[%c0_8, %c0_9] : memref<32x32xf32, #tpu.memory_space<vmem>>, vector<32x32xf32>
    %cst = arith.constant dense<0.000000e+00> : vector<8x32xf32>
    %7 = tpu.matmul %1, %6, %cst {dimension_numbers = #tpu.dot_dimension_numbers<[1], [1], [0], [0], [0, 0, 1, 0], [], []>} : vector<8x32xf32>, vector<32x32xf32>, vector<8x32xf32> -> vector<8x32xf32>
    %c0_10 = arith.constant 0 : index
    %c0_11 = arith.constant 0 : index
    %8 = vector.load %arg7[%c0_10, %c0_11] : memref<1x32xf32, #tpu.memory_space<vmem>>, vector<1x32xf32>
    %9 = vector.broadcast %8 : vector<1x32xf32> to vector<8x32xf32>
    %10 = arith.addf %7, %9 : vector<8x32xf32>
    %c0_12 = arith.constant 0 : index
    %c0_13 = arith.constant 0 : index
    %11 = vector.load %arg8[%c0_12, %c0_13] : memref<32x32xf32, #tpu.memory_space<vmem>>, vector<32x32xf32>
    %cst_14 = arith.constant dense<0.000000e+00> : vector<8x32xf32>
    %12 = tpu.matmul %3, %11, %cst_14 {dimension_numbers = #tpu.dot_dimension_numbers<[1], [1], [0], [0], [0, 0, 1, 0], [], []>} : vector<8x32xf32>, vector<32x32xf32>, vector<8x32xf32> -> vector<8x32xf32>
    %c0_15 = arith.constant 0 : index
    %c0_16 = arith.constant 0 : index
    %13 = vector.load %arg9[%c0_15, %c0_16] : memref<1x32xf32, #tpu.memory_space<vmem>>, vector<1x32xf32>
    %14 = vector.broadcast %13 : vector<1x32xf32> to vector<8x32xf32>
    %15 = arith.addf %12, %14 : vector<8x32xf32>
    %c0_17 = arith.constant 0 : index
    %c0_18 = arith.constant 0 : index
    %16 = vector.load %arg10[%c0_17, %c0_18] : memref<32x32xf32, #tpu.memory_space<vmem>>, vector<32x32xf32>
    %cst_19 = arith.constant dense<0.000000e+00> : vector<8x32xf32>
    %17 = tpu.matmul %5, %16, %cst_19 {dimension_numbers = #tpu.dot_dimension_numbers<[1], [1], [0], [0], [0, 0, 1, 0], [], []>} : vector<8x32xf32>, vector<32x32xf32>, vector<8x32xf32> -> vector<8x32xf32>
    %c0_20 = arith.constant 0 : index
    %c0_21 = arith.constant 0 : index
    %18 = vector.load %arg11[%c0_20, %c0_21] : memref<1x32xf32, #tpu.memory_space<vmem>>, vector<1x32xf32>
    %19 = vector.broadcast %18 : vector<1x32xf32> to vector<8x32xf32>
    %20 = arith.addf %17, %19 : vector<8x32xf32>
    %21 = vector.extract_strided_slice %10 {offsets = [0, 0], sizes = [8, 8], strides = [1, 1]} : vector<8x32xf32> to vector<8x8xf32>
    %22 = vector.extract_strided_slice %15 {offsets = [0, 0], sizes = [8, 8], strides = [1, 1]} : vector<8x32xf32> to vector<8x8xf32>
    %23 = vector.extract_strided_slice %20 {offsets = [0, 0], sizes = [8, 8], strides = [1, 1]} : vector<8x32xf32> to vector<8x8xf32>
    %cst_22 = arith.constant dense<0.000000e+00> : vector<8x8xf32>
    %24 = tpu.matmul %21, %22, %cst_22 {dimension_numbers = #tpu.dot_dimension_numbers<[1], [1], [0], [0], [0, 0, 1, 0], [], []>} : vector<8x8xf32>, vector<8x8xf32>, vector<8x8xf32> -> vector<8x8xf32>
    %cst_23 = arith.constant 0.353553385 : f32
    %25 = vector.broadcast %cst_23 : f32 to vector<8x8xf32>
    %26 = arith.mulf %24, %25 : vector<8x8xf32>
    %c0_24 = arith.constant 0 : index
    %c0_25 = arith.constant 0 : index
    %c0_26 = arith.constant 0 : index
    %27 = vector.load %arg5[%c0_24, %c0_25, %c0_26] : memref<1x1x8xf32, #tpu.memory_space<vmem>>, vector<1x1x8xf32>
    %28 = vector.shape_cast %27 : vector<1x1x8xf32> to vector<1x8xf32>
    %29 = vector.broadcast %28 : vector<1x8xf32> to vector<8x8xf32>
    %30 = arith.addf %26, %29 : vector<8x8xf32>
    %cst_27 = arith.constant dense<0xFF800000> : vector<8xf32>
    %31 = vector.multi_reduction <maximumf>, %30, %cst_27 [1] : vector<8x8xf32> to vector<8xf32>
    %32 = vector.shape_cast %31 : vector<8xf32> to vector<8x1xf32>
    %33 = vector.broadcast %32 : vector<8x1xf32> to vector<8x8xf32>
    %34 = arith.subf %30, %33 : vector<8x8xf32>
    %35 = math.exp %34 : vector<8x8xf32>
    %cst_28 = arith.constant dense<0.000000e+00> : vector<8xf32>
    %36 = vector.multi_reduction <add>, %35, %cst_28 [1] : vector<8x8xf32> to vector<8xf32>
    %37 = vector.shape_cast %36 : vector<8xf32> to vector<8x1xf32>
    %38 = tpu.reciprocal %37 {approx = true} : vector<8x1xf32> -> vector<8x1xf32>
    %39 = vector.broadcast %38 : vector<8x1xf32> to vector<8x8xf32>
    %40 = arith.mulf %35, %39 : vector<8x8xf32>
    %c0_29 = arith.constant 0 : index
    %c0_30 = arith.constant 0 : index
    %c0_31 = arith.constant 0 : index
    %c0_32 = arith.constant 0 : index
    %41 = vector.load %arg17[%c0_29, %c0_30, %c0_31, %c0_32] : memref<1x4x8x8xf32, #tpu.memory_space<vmem>>, vector<1x1x8x8xf32>
    %42 = vector.shape_cast %41 : vector<1x1x8x8xf32> to vector<8x8xf32>
    %43 = vector.shape_cast %40 : vector<8x8xf32> to vector<1x1x8x8xf32>
    tpu.vector_store %arg17[%c0_29, %c0_30, %c0_31, %c0_32], %43 {strides = array<i32>} : memref<1x4x8x8xf32, #tpu.memory_space<vmem>>, vector<1x1x8x8xf32>,
    %cst_33 = arith.constant dense<0.000000e+00> : vector<8x8xf32>
    %44 = tpu.matmul %40, %23, %cst_33 {dimension_numbers = #tpu.dot_dimension_numbers<[1], [0], [0], [1], [0, 0, 1, 1], [], []>} : vector<8x8xf32>, vector<8x8xf32>, vector<8x8xf32> -> vector<8x8xf32>
    %c0_34 = arith.constant 0 : index
    %c0_35 = arith.constant 0 : index
    %45 = vector.load %arg18[%c0_34, %c0_35] : memref<8x32xf32, #tpu.memory_space<vmem>>, vector<8x8xf32>
    tpu.vector_store %arg18[%c0_34, %c0_35], %44 {strides = array<i32>} : memref<8x32xf32, #tpu.memory_space<vmem>>, vector<8x8xf32>,
    %46 = vector.extract_strided_slice %10 {offsets = [0, 8], sizes = [8, 8], strides = [1, 1]} : vector<8x32xf32> to vector<8x8xf32>
    %47 = vector.extract_strided_slice %15 {offsets = [0, 8], sizes = [8, 8], strides = [1, 1]} : vector<8x32xf32> to vector<8x8xf32>
    %48 = vector.extract_strided_slice %20 {offsets = [0, 8], sizes = [8, 8], strides = [1, 1]} : vector<8x32xf32> to vector<8x8xf32>
    %cst_36 = arith.constant dense<0.000000e+00> : vector<8x8xf32>
    %49 = tpu.matmul %46, %47, %cst_36 {dimension_numbers = #tpu.dot_dimension_numbers<[1], [1], [0], [0], [0, 0, 1, 0], [], []>} : vector<8x8xf32>, vector<8x8xf32>, vector<8x8xf32> -> vector<8x8xf32>
    %cst_37 = arith.constant 0.353553385 : f32
    %50 = vector.broadcast %cst_37 : f32 to vector<8x8xf32>
    %51 = arith.mulf %49, %50 : vector<8x8xf32>
    %c0_38 = arith.constant 0 : index
    %c0_39 = arith.constant 0 : index
    %c0_40 = arith.constant 0 : index
    %52 = vector.load %arg5[%c0_38, %c0_39, %c0_40] : memref<1x1x8xf32, #tpu.memory_space<vmem>>, vector<1x1x8xf32>
    %53 = vector.shape_cast %52 : vector<1x1x8xf32> to vector<1x8xf32>
    %54 = vector.broadcast %53 : vector<1x8xf32> to vector<8x8xf32>
    %55 = arith.addf %51, %54 : vector<8x8xf32>
    %cst_41 = arith.constant dense<0xFF800000> : vector<8xf32>
    %56 = vector.multi_reduction <maximumf>, %55, %cst_41 [1] : vector<8x8xf32> to vector<8xf32>
    %57 = vector.shape_cast %56 : vector<8xf32> to vector<8x1xf32>
    %58 = vector.broadcast %57 : vector<8x1xf32> to vector<8x8xf32>
    %59 = arith.subf %55, %58 : vector<8x8xf32>
    %60 = math.exp %59 : vector<8x8xf32>
    %cst_42 = arith.constant dense<0.000000e+00> : vector<8xf32>
    %61 = vector.multi_reduction <add>, %60, %cst_42 [1] : vector<8x8xf32> to vector<8xf32>
    %62 = vector.shape_cast %61 : vector<8xf32> to vector<8x1xf32>
    %63 = tpu.reciprocal %62 {approx = true} : vector<8x1xf32> -> vector<8x1xf32>
    %64 = vector.broadcast %63 : vector<8x1xf32> to vector<8x8xf32>
    %65 = arith.mulf %60, %64 : vector<8x8xf32>
    %c0_43 = arith.constant 0 : index
    %c1 = arith.constant 1 : index
    %c0_44 = arith.constant 0 : index
    %c0_45 = arith.constant 0 : index
    %66 = vector.load %arg17[%c0_43, %c1, %c0_44, %c0_45] : memref<1x4x8x8xf32, #tpu.memory_space<vmem>>, vector<1x1x8x8xf32>
    %67 = vector.shape_cast %66 : vector<1x1x8x8xf32> to vector<8x8xf32>
    %68 = vector.shape_cast %65 : vector<8x8xf32> to vector<1x1x8x8xf32>
    tpu.vector_store %arg17[%c0_43, %c1, %c0_44, %c0_45], %68 {strides = array<i32>} : memref<1x4x8x8xf32, #tpu.memory_space<vmem>>, vector<1x1x8x8xf32>,
    %cst_46 = arith.constant dense<0.000000e+00> : vector<8x8xf32>
    %69 = tpu.matmul %65, %48, %cst_46 {dimension_numbers = #tpu.dot_dimension_numbers<[1], [0], [0], [1], [0, 0, 1, 1], [], []>} : vector<8x8xf32>, vector<8x8xf32>, vector<8x8xf32> -> vector<8x8xf32>
    %c0_47 = arith.constant 0 : index
    %c8 = arith.constant 8 : index
    %70 = vector.load %arg18[%c0_47, %c8] : memref<8x32xf32, #tpu.memory_space<vmem>>, vector<8x8xf32>
    tpu.vector_store %arg18[%c0_47, %c8], %69 {strides = array<i32>} : memref<8x32xf32, #tpu.memory_space<vmem>>, vector<8x8xf32>,
    %71 = vector.extract_strided_slice %10 {offsets = [0, 16], sizes = [8, 8], strides = [1, 1]} : vector<8x32xf32> to vector<8x8xf32>
    %72 = vector.extract_strided_slice %15 {offsets = [0, 16], sizes = [8, 8], strides = [1, 1]} : vector<8x32xf32> to vector<8x8xf32>
    %73 = vector.extract_strided_slice %20 {offsets = [0, 16], sizes = [8, 8], strides = [1, 1]} : vector<8x32xf32> to vector<8x8xf32>
    %cst_48 = arith.constant dense<0.000000e+00> : vector<8x8xf32>
    %74 = tpu.matmul %71, %72, %cst_48 {dimension_numbers = #tpu.dot_dimension_numbers<[1], [1], [0], [0], [0, 0, 1, 0], [], []>} : vector<8x8xf32>, vector<8x8xf32>, vector<8x8xf32> -> vector<8x8xf32>
    %cst_49 = arith.constant 0.353553385 : f32
    %75 = vector.broadcast %cst_49 : f32 to vector<8x8xf32>
    %76 = arith.mulf %74, %75 : vector<8x8xf32>
    %c0_50 = arith.constant 0 : index
    %c0_51 = arith.constant 0 : index
    %c0_52 = arith.constant 0 : index
    %77 = vector.load %arg5[%c0_50, %c0_51, %c0_52] : memref<1x1x8xf32, #tpu.memory_space<vmem>>, vector<1x1x8xf32>
    %78 = vector.shape_cast %77 : vector<1x1x8xf32> to vector<1x8xf32>
    %79 = vector.broadcast %78 : vector<1x8xf32> to vector<8x8xf32>
    %80 = arith.addf %76, %79 : vector<8x8xf32>
    %cst_53 = arith.constant dense<0xFF800000> : vector<8xf32>
    %81 = vector.multi_reduction <maximumf>, %80, %cst_53 [1] : vector<8x8xf32> to vector<8xf32>
    %82 = vector.shape_cast %81 : vector<8xf32> to vector<8x1xf32>
    %83 = vector.broadcast %82 : vector<8x1xf32> to vector<8x8xf32>
    %84 = arith.subf %80, %83 : vector<8x8xf32>
    %85 = math.exp %84 : vector<8x8xf32>
    %cst_54 = arith.constant dense<0.000000e+00> : vector<8xf32>
    %86 = vector.multi_reduction <add>, %85, %cst_54 [1] : vector<8x8xf32> to vector<8xf32>
    %87 = vector.shape_cast %86 : vector<8xf32> to vector<8x1xf32>
    %88 = tpu.reciprocal %87 {approx = true} : vector<8x1xf32> -> vector<8x1xf32>
    %89 = vector.broadcast %88 : vector<8x1xf32> to vector<8x8xf32>
    %90 = arith.mulf %85, %89 : vector<8x8xf32>
    %c0_55 = arith.constant 0 : index
    %c2 = arith.constant 2 : index
    %c0_56 = arith.constant 0 : index
    %c0_57 = arith.constant 0 : index
    %91 = vector.load %arg17[%c0_55, %c2, %c0_56, %c0_57] : memref<1x4x8x8xf32, #tpu.memory_space<vmem>>, vector<1x1x8x8xf32>
    %92 = vector.shape_cast %91 : vector<1x1x8x8xf32> to vector<8x8xf32>
    %93 = vector.shape_cast %90 : vector<8x8xf32> to vector<1x1x8x8xf32>
    tpu.vector_store %arg17[%c0_55, %c2, %c0_56, %c0_57], %93 {strides = array<i32>} : memref<1x4x8x8xf32, #tpu.memory_space<vmem>>, vector<1x1x8x8xf32>,
    %cst_58 = arith.constant dense<0.000000e+00> : vector<8x8xf32>
    %94 = tpu.matmul %90, %73, %cst_58 {dimension_numbers = #tpu.dot_dimension_numbers<[1], [0], [0], [1], [0, 0, 1, 1], [], []>} : vector<8x8xf32>, vector<8x8xf32>, vector<8x8xf32> -> vector<8x8xf32>
    %c0_59 = arith.constant 0 : index
    %c16 = arith.constant 16 : index
    %95 = vector.load %arg18[%c0_59, %c16] : memref<8x32xf32, #tpu.memory_space<vmem>>, vector<8x8xf32>
    tpu.vector_store %arg18[%c0_59, %c16], %94 {strides = array<i32>} : memref<8x32xf32, #tpu.memory_space<vmem>>, vector<8x8xf32>,
    %96 = vector.extract_strided_slice %10 {offsets = [0, 24], sizes = [8, 8], strides = [1, 1]} : vector<8x32xf32> to vector<8x8xf32>
    %97 = vector.extract_strided_slice %15 {offsets = [0, 24], sizes = [8, 8], strides = [1, 1]} : vector<8x32xf32> to vector<8x8xf32>
    %98 = vector.extract_strided_slice %20 {offsets = [0, 24], sizes = [8, 8], strides = [1, 1]} : vector<8x32xf32> to vector<8x8xf32>
    %cst_60 = arith.constant dense<0.000000e+00> : vector<8x8xf32>
    %99 = tpu.matmul %96, %97, %cst_60 {dimension_numbers = #tpu.dot_dimension_numbers<[1], [1], [0], [0], [0, 0, 1, 0], [], []>} : vector<8x8xf32>, vector<8x8xf32>, vector<8x8xf32> -> vector<8x8xf32>
    %cst_61 = arith.constant 0.353553385 : f32
    %100 = vector.broadcast %cst_61 : f32 to vector<8x8xf32>
    %101 = arith.mulf %99, %100 : vector<8x8xf32>
    %c0_62 = arith.constant 0 : index
    %c0_63 = arith.constant 0 : index
    %c0_64 = arith.constant 0 : index
    %102 = vector.load %arg5[%c0_62, %c0_63, %c0_64] : memref<1x1x8xf32, #tpu.memory_space<vmem>>, vector<1x1x8xf32>
    %103 = vector.shape_cast %102 : vector<1x1x8xf32> to vector<1x8xf32>
    %104 = vector.broadcast %103 : vector<1x8xf32> to vector<8x8xf32>
    %105 = arith.addf %101, %104 : vector<8x8xf32>
    %cst_65 = arith.constant dense<0xFF800000> : vector<8xf32>
    %106 = vector.multi_reduction <maximumf>, %105, %cst_65 [1] : vector<8x8xf32> to vector<8xf32>
    %107 = vector.shape_cast %106 : vector<8xf32> to vector<8x1xf32>
    %108 = vector.broadcast %107 : vector<8x1xf32> to vector<8x8xf32>
    %109 = arith.subf %105, %108 : vector<8x8xf32>
    %110 = math.exp %109 : vector<8x8xf32>
    %cst_66 = arith.constant dense<0.000000e+00> : vector<8xf32>
    %111 = vector.multi_reduction <add>, %110, %cst_66 [1] : vector<8x8xf32> to vector<8xf32>
    %112 = vector.shape_cast %111 : vector<8xf32> to vector<8x1xf32>
    %113 = tpu.reciprocal %112 {approx = true} : vector<8x1xf32> -> vector<8x1xf32>
    %114 = vector.broadcast %113 : vector<8x1xf32> to vector<8x8xf32>
    %115 = arith.mulf %110, %114 : vector<8x8xf32>
    %c0_67 = arith.constant 0 : index
    %c3 = arith.constant 3 : index
    %c0_68 = arith.constant 0 : index
    %c0_69 = arith.constant 0 : index
    %116 = vector.load %arg17[%c0_67, %c3, %c0_68, %c0_69] : memref<1x4x8x8xf32, #tpu.memory_space<vmem>>, vector<1x1x8x8xf32>
    %117 = vector.shape_cast %116 : vector<1x1x8x8xf32> to vector<8x8xf32>
    %118 = vector.shape_cast %115 : vector<8x8xf32> to vector<1x1x8x8xf32>
    tpu.vector_store %arg17[%c0_67, %c3, %c0_68, %c0_69], %118 {strides = array<i32>} : memref<1x4x8x8xf32, #tpu.memory_space<vmem>>, vector<1x1x8x8xf32>,
    %cst_70 = arith.constant dense<0.000000e+00> : vector<8x8xf32>
    %119 = tpu.matmul %115, %98, %cst_70 {dimension_numbers = #tpu.dot_dimension_numbers<[1], [0], [0], [1], [0, 0, 1, 1], [], []>} : vector<8x8xf32>, vector<8x8xf32>, vector<8x8xf32> -> vector<8x8xf32>
    %c0_71 = arith.constant 0 : index
    %c24 = arith.constant 24 : index
    %120 = vector.load %arg18[%c0_71, %c24] : memref<8x32xf32, #tpu.memory_space<vmem>>, vector<8x8xf32>
    tpu.vector_store %arg18[%c0_71, %c24], %119 {strides = array<i32>} : memref<8x32xf32, #tpu.memory_space<vmem>>, vector<8x8xf32>,
    %c0_72 = arith.constant 0 : index
    %c0_73 = arith.constant 0 : index
    %121 = vector.load %arg18[%c0_72, %c0_73] : memref<8x32xf32, #tpu.memory_space<vmem>>, vector<8x32xf32>
    %c0_74 = arith.constant 0 : index
    %c0_75 = arith.constant 0 : index
    %122 = vector.load %arg12[%c0_74, %c0_75] : memref<32x32xf32, #tpu.memory_space<vmem>>, vector<32x32xf32>
    %cst_76 = arith.constant dense<0.000000e+00> : vector<8x32xf32>
    %123 = tpu.matmul %121, %122, %cst_76 {dimension_numbers = #tpu.dot_dimension_numbers<[1], [1], [0], [0], [0, 0, 1, 0], [], []>} : vector<8x32xf32>, vector<32x32xf32>, vector<8x32xf32> -> vector<8x32xf32>
    %c0_77 = arith.constant 0 : index
    %c0_78 = arith.constant 0 : index
    %124 = vector.load %arg13[%c0_77, %c0_78] : memref<1x32xf32, #tpu.memory_space<vmem>>, vector<1x32xf32>
    %125 = vector.broadcast %124 : vector<1x32xf32> to vector<8x32xf32>
    %126 = arith.addf %123, %125 : vector<8x32xf32>
    %127 = arith.addf %126, %1 : vector<8x32xf32>
    %cst_79 = arith.constant dense<0.000000e+00> : vector<8xf32>
    %128 = vector.multi_reduction <add>, %127, %cst_79 [1] : vector<8x32xf32> to vector<8xf32>
    %129 = vector.shape_cast %128 : vector<8xf32> to vector<8x1xf32>
    %cst_80 = arith.constant 3.200000e+01 : f32
    %130 = vector.broadcast %cst_80 : f32 to vector<8x1xf32>
    %131 = arith.divf %129, %130 : vector<8x1xf32>
    %132 = vector.broadcast %131 : vector<8x1xf32> to vector<8x32xf32>
    %133 = arith.subf %127, %132 : vector<8x32xf32>
    %134 = arith.mulf %133, %133 : vector<8x32xf32>
    %cst_81 = arith.constant dense<0.000000e+00> : vector<8xf32>
    %135 = vector.multi_reduction <add>, %134, %cst_81 [1] : vector<8x32xf32> to vector<8xf32>
    %136 = vector.shape_cast %135 : vector<8xf32> to vector<8x1xf32>
    %cst_82 = arith.constant 3.200000e+01 : f32
    %137 = vector.broadcast %cst_82 : f32 to vector<8x1xf32>
    %138 = arith.divf %136, %137 : vector<8x1xf32>
    %cst_83 = arith.constant 9.99999996E-13 : f32
    %139 = vector.broadcast %cst_83 : f32 to vector<8x1xf32>
    %140 = arith.addf %138, %139 : vector<8x1xf32>
    %141 = math.rsqrt %140 : vector<8x1xf32>
    %142 = vector.broadcast %141 : vector<8x1xf32> to vector<8x32xf32>
    %143 = arith.mulf %133, %142 : vector<8x32xf32>
    %c0_84 = arith.constant 0 : index
    %c0_85 = arith.constant 0 : index
    %144 = vector.load %arg14[%c0_84, %c0_85] : memref<1x32xf32, #tpu.memory_space<vmem>>, vector<1x32xf32>
    %145 = vector.broadcast %144 : vector<1x32xf32> to vector<8x32xf32>
    %146 = arith.mulf %143, %145 : vector<8x32xf32>
    %c0_86 = arith.constant 0 : index
    %c0_87 = arith.constant 0 : index
    %147 = vector.load %arg15[%c0_86, %c0_87] : memref<1x32xf32, #tpu.memory_space<vmem>>, vector<1x32xf32>
    %148 = vector.broadcast %147 : vector<1x32xf32> to vector<8x32xf32>
    %149 = arith.addf %146, %148 : vector<8x32xf32>
    %c0_88 = arith.constant 0 : index
    %c0_89 = arith.constant 0 : index
    %c0_90 = arith.constant 0 : index
    %150 = vector.load %arg16[%c0_88, %c0_89, %c0_90] : memref<1x8x32xf32, #tpu.memory_space<vmem>>, vector<1x8x32xf32>
    %151 = vector.shape_cast %150 : vector<1x8x32xf32> to vector<8x32xf32>
    %152 = vector.shape_cast %149 : vector<8x32xf32> to vector<1x8x32xf32>
    tpu.vector_store %arg16[%c0_88, %c0_89, %c0_90], %152 {strides = array<i32>} : memref<1x8x32xf32, #tpu.memory_space<vmem>>, vector<1x8x32xf32>,
    return
  }
  func.func @transform_0(%arg0: i32, %arg1: i32) -> (i32, i32, i32) {
    %c0_i32 = arith.constant 0 : i32
    %c0_i32_0 = arith.constant 0 : i32
    return %arg0, %arg1, %c0_i32 : i32, i32, i32
  }
  func.func @transform_1(%arg0: i32, %arg1: i32) -> (i32, i32, i32) {
    %c0_i32 = arith.constant 0 : i32
    %c0_i32_0 = arith.constant 0 : i32
    %c0_i32_1 = arith.constant 0 : i32
    return %arg0, %c0_i32, %c0_i32_0 : i32, i32, i32
  }
  func.func @transform_2(%arg0: i32, %arg1: i32) -> (i32, i32, i32) {
    %c0_i32 = arith.constant 0 : i32
    %c0_i32_0 = arith.constant 0 : i32
    %c0_i32_1 = arith.constant 0 : i32
    return %arg0, %c0_i32, %c0_i32_0 : i32, i32, i32
  }
  func.func @transform_3(%arg0: i32, %arg1: i32) -> (i32, i32, i32) {
    %c0_i32 = arith.constant 0 : i32
    %c0_i32_0 = arith.constant 0 : i32
    %c0_i32_1 = arith.constant 0 : i32
    return %arg0, %c0_i32, %c0_i32_0 : i32, i32, i32
  }
  func.func @transform_4(%arg0: i32, %arg1: i32) -> (i32, i32) {
    %c0_i32 = arith.constant 0 : i32
    %c0_i32_0 = arith.constant 0 : i32
    %c0_i32_1 = arith.constant 0 : i32
    return %c0_i32, %c0_i32_0 : i32, i32
  }
  func.func @transform_5(%arg0: i32, %arg1: i32) -> (i32, i32) {
    %c0_i32 = arith.constant 0 : i32
    %c0_i32_0 = arith.constant 0 : i32
    %c0_i32_1 = arith.constant 0 : i32
    return %c0_i32, %c0_i32_0 : i32, i32
  }
  func.func @transform_6(%arg0: i32, %arg1: i32) -> (i32, i32) {
    %c0_i32 = arith.constant 0 : i32
    %c0_i32_0 = arith.constant 0 : i32
    %c0_i32_1 = arith.constant 0 : i32
    return %c0_i32, %c0_i32_0 : i32, i32
  }
  func.func @transform_7(%arg0: i32, %arg1: i32) -> (i32, i32) {
    %c0_i32 = arith.constant 0 : i32
    %c0_i32_0 = arith.constant 0 : i32
    %c0_i32_1 = arith.constant 0 : i32
    return %c0_i32, %c0_i32_0 : i32, i32
  }
  func.func @transform_8(%arg0: i32, %arg1: i32) -> (i32, i32) {
    %c0_i32 = arith.constant 0 : i32
    %c0_i32_0 = arith.constant 0 : i32
    %c0_i32_1 = arith.constant 0 : i32
    return %c0_i32, %c0_i32_0 : i32, i32
  }
  func.func @transform_9(%arg0: i32, %arg1: i32) -> (i32, i32) {
    %c0_i32 = arith.constant 0 : i32
    %c0_i32_0 = arith.constant 0 : i32
    %c0_i32_1 = arith.constant 0 : i32
    return %c0_i32, %c0_i32_0 : i32, i32
  }
  func.func @transform_10(%arg0: i32, %arg1: i32) -> (i32, i32) {
    %c0_i32 = arith.constant 0 : i32
    %c0_i32_0 = arith.constant 0 : i32
    %c0_i32_1 = arith.constant 0 : i32
    return %c0_i32, %c0_i32_0 : i32, i32
  }
  func.func @transform_11(%arg0: i32, %arg1: i32) -> (i32, i32) {
    %c0_i32 = arith.constant 0 : i32
    %c0_i32_0 = arith.constant 0 : i32
    %c0_i32_1 = arith.constant 0 : i32
    return %c0_i32, %c0_i32_0 : i32, i32
  }
  func.func @transform_12(%arg0: i32, %arg1: i32) -> (i32, i32) {
    %c0_i32 = arith.constant 0 : i32
    %c0_i32_0 = arith.constant 0 : i32
    %c0_i32_1 = arith.constant 0 : i32
    return %c0_i32, %c0_i32_0 : i32, i32
  }
  func.func @transform_13(%arg0: i32, %arg1: i32) -> (i32, i32) {
    %c0_i32 = arith.constant 0 : i32
    %c0_i32_0 = arith.constant 0 : i32
    %c0_i32_1 = arith.constant 0 : i32
    return %c0_i32, %c0_i32_0 : i32, i32
  }
  func.func @transform_14(%arg0: i32, %arg1: i32) -> (i32, i32, i32) {
    %c0_i32 = arith.constant 0 : i32
    %c0_i32_0 = arith.constant 0 : i32
    return %arg0, %arg1, %c0_i32 : i32, i32, i32
  }
  func.func @transform_15(%arg0: i32, %arg1: i32) -> (i32, i32, i32, i32) {
    %c0_i32 = arith.constant 0 : i32
    %c0_i32_0 = arith.constant 0 : i32
    %c0_i32_1 = arith.constant 0 : i32
    return %arg0, %c0_i32, %arg1, %c0_i32_0 : i32, i32, i32, i32
  }
}

</mosaic_0001>

<llo_original>
// kernel: tpu_custom_call.1
$region0: #{tpu_custom_call.1}
  #allocation0 [shape = 'u32[]', space=smem, size = 0x4, offset = 0x4, fixed_abs, tag = 'smem constant byte address 0x4 - core index']
  #allocation1 [shape = 'u32[72,128]{1,0:T(1,128)}', space=vmem, size = 0x9000, scoped, tag = 'internal scratch']
  #allocation2 [shape = 'f32[8,32]{1,0:T(8,128)}', space=vmem, size = 0x1000, scoped, tag = 'scratch operand']
  %s0 = inlined_call_operand.hbm [shape: f32[2,8,32], index: 0, kind: input, shape index: {}]
  %s1 = inlined_call_operand.hbm [shape: f32[2,8,32], index: 1, kind: input, shape index: {}]
  %s2 = inlined_call_operand.hbm [shape: f32[2,8,32], index: 2, kind: input, shape index: {}]
  %s3 = inlined_call_operand.vmem [shape: f32[2,1,8], index: 3, kind: input, shape index: {}]
  %s4 = inlined_call_operand.hbm [shape: f32[32,32], index: 4, kind: input, shape index: {}]
  %s5 = inlined_call_operand.vmem [shape: f32[1,32], index: 5, kind: input, shape index: {}]
  %s6 = inlined_call_operand.hbm [shape: f32[32,32], index: 6, kind: input, shape index: {}]
  %s7 = inlined_call_operand.vmem [shape: f32[1,32], index: 7, kind: input, shape index: {}]
  %s8 = inlined_call_operand.hbm [shape: f32[32,32], index: 8, kind: input, shape index: {}]
  %s9 = inlined_call_operand.vmem [shape: f32[1,32], index: 9, kind: input, shape index: {}]
  %s10 = inlined_call_operand.hbm [shape: f32[32,32], index: 10, kind: input, shape index: {}]
  %s11 = inlined_call_operand.vmem [shape: f32[1,32], index: 11, kind: input, shape index: {}]
  %s12 = inlined_call_operand.vmem [shape: f32[1,32], index: 12, kind: input, shape index: {}]
  %s13 = inlined_call_operand.vmem [shape: f32[1,32], index: 13, kind: input, shape index: {}]
  %s14 = inlined_call_operand.hbm [shape: f32[2,8,32], index: 14, kind: output, shape index: {0}]
  %s15 = inlined_call_operand.hbm [shape: f32[2,4,8,8], index: 15, kind: output, shape index: {1}]
  %16 = xla_tuple %s14, %s15
  %s17 = sld [smem:[#allocation0]]
  $region125: #{tpu_custom_call.1} parent=0
    _
  %s19 = ssub.s32 1, %s17
  %s20 = scalar_select 0, %s19, %s17
  $region1: #{tpu_custom_call.1} parent=0
    #allocation3 [shape = 'u8[8192]{0}', space=vmem, size = 0x2000, scoped, tag = 'input window, operand 0']
    #allocation4 [shape = 's32[2]{0}', space=sflag, size = 0x8, scoped, tag = 'scoped memory for tpu_custom_call.1']
    #allocation5 [shape = 's32[2]{0}', space=sflag, size = 0x8, scoped, tag = 'scoped memory for tpu_custom_call.1']
    #allocation6 [shape = 'u8[8192]{0}', space=vmem, size = 0x2000, scoped, tag = 'input window, operand 1']
    #allocation7 [shape = 's32[2]{0}', space=sflag, size = 0x8, scoped, tag = 'scoped memory for tpu_custom_call.1']
    #allocation8 [shape = 'u8[8192]{0}', space=vmem, size = 0x2000, scoped, tag = 'input window, operand 2']
    #allocation9 [shape = 'u8[16384]{0}', space=vmem, size = 0x4000, scoped, tag = 'input window, operand 4, single buffered']
    #allocation10 [shape = 's32[1]{0}', space=sflag, size = 0x4, scoped, tag = 'scoped memory for tpu_custom_call.1']
    #allocation11 [shape = 'u8[16384]{0}', space=vmem, size = 0x4000, scoped, tag = 'input window, operand 6, single buffered']
    #allocation12 [shape = 'u8[16384]{0}', space=vmem, size = 0x4000, scoped, tag = 'input window, operand 8, single buffered']
    #allocation13 [shape = 's32[1]{0}', space=sflag, size = 0x4, scoped, tag = 'scoped memory for tpu_custom_call.1']
    #allocation14 [shape = 'u8[16384]{0}', space=vmem, size = 0x4000, scoped, tag = 'input window, operand 10, single buffered']
    #allocation15 [shape = 'u8[8192]{0}', space=vmem, size = 0x2000, scoped, tag = 'output window, operand 0']
    #allocation16 [shape = 'u8[32768]{0}', space=vmem, size = 0x8000, scoped, tag = 'output window, operand 1']
    #allocation17 [shape = 's32[2]{0}', space=sflag, size = 0x8, scoped, tag = 'scoped memory for tpu_custom_call.1']
    %21 = vsyncpa [#allocation4], 0
    %s22 = scalar_lea.sflag [#allocation4], 1
    %23 = vsyncpa %s22, 0
    %24 = vsyncpa [#allocation7], 0
    %s25 = scalar_lea.sflag [#allocation7], 1
    %26 = vsyncpa %s25, 0
    %27 = vsyncpa [#allocation10], 0
    %28 = vsyncpa [#allocation13], 0
    %29 = vsyncpa [#allocation5], 0
    %s30 = scalar_lea.sflag [#allocation5], 1
    %31 = vsyncpa %s30, 0
    %32 = vsyncpa [#allocation17], 0
    %s33 = scalar_lea.sflag [#allocation17], 1
    %34 = vsyncpa %s33, 0
    loop: start=0, step=1, limit=4
    $region2: #{tpu_custom_call.1} parent=1 // loop_pre_header
      _
    $region3: #{tpu_custom_call.1} parent=1 // loop_header
      %s36 = sphi 0, %s40
      %p37 = scmp.ge.s32.totalorder %s36, 4
      %s43 = sphi 0, %s55
      %s44 = sphi 0, %s51
      %s45 = sphi 0, %s43
      %s46 = sphi 0, %s44
      %s47 = sphi 0, %s45
      %s48 = sphi 0, %s46
      %s60 = sphi 0, %s62
      %s63 = sphi 0, %s60
      %s64 = sphi 0, %s63
      %s80 = sphi 0, %s64
      %s86 = sphi 0, %s88
      %s89 = sphi 0, %s86
      %s90 = sphi 0, %s89
      %s106 = sphi 0, %s90
      %s112 = sphi 0, %s114
      %s115 = sphi 0, %s112
      %s116 = sphi 0, %s115
      %s132 = sphi 0, %s116
      %s138 = sphi 0, %s140
      %s141 = sphi 0, %s138
      %s142 = sphi 0, %s141
      %s158 = sphi 0, %s142
      %s162 = sphi 0, %s162
      %s164 = sphi 0, %s162
      %s165 = sphi 0, %s164
      %s179 = sphi 0, %s165
      %s183 = sphi 0, %s183
      %s185 = sphi 0, %s183
      %s186 = sphi 0, %s185
      %s200 = sphi 0, %s186
      %s204 = sphi 0, %s204
      %s206 = sphi 0, %s204
      %s207 = sphi 0, %s206
      %s221 = sphi 0, %s207
      %s225 = sphi 0, %s225
      %s227 = sphi 0, %s225
      %s228 = sphi 0, %s227
      %s242 = sphi 0, %s228
      %s246 = sphi 0, %s246
      %s248 = sphi 0, %s246
      %s249 = sphi 0, %s248
      %s263 = sphi 0, %s249
      %s267 = sphi 0, %s267
      %s269 = sphi 0, %s267
      %s270 = sphi 0, %s269
      %s284 = sphi 0, %s270
      %s288 = sphi 0, %s288
      %s290 = sphi 0, %s288
      %s291 = sphi 0, %s290
      %s305 = sphi 0, %s291
      %s309 = sphi 0, %s309
      %s311 = sphi 0, %s309
      %s312 = sphi 0, %s311
      %s326 = sphi 0, %s312
      %s330 = sphi 0, %s330
      %s332 = sphi 0, %s330
      %s333 = sphi 0, %s332
      %s347 = sphi 0, %s333
      %s351 = sphi 0, %s351
      %s353 = sphi 0, %s351
      %s354 = sphi 0, %s353
      %s368 = sphi 0, %s354
      %s376 = sphi 0, %s378
      %s379 = sphi 0, %s376
      %s380 = sphi 0, %s379
      %s396 = sphi 0, %s380
      %s404 = sphi 0, %s406
      %s407 = sphi 0, %s404
      %s408 = sphi 0, %s407
      %s424 = sphi 0, %s408
    $region4: #{tpu_custom_call.1} parent=1 // loop_header_branch
      %39 = sbr.rel (%p37) target = $region8
    $region5: #{tpu_custom_call.1} parent=1 // loop_body
      %s41 = ssub.s32 %s36, 1
      %s42 = ssub.s32 %s36, 2
      %s49 = sadd.s32 1, %s44
      %p50 = scmp.ge.s32.totalorder %s49, 1
      %s51 = scalar_select %p50, 0, %s49
      %s52 = sadd.s32 1, %s43
      %s53 = scalar_select %p50, %s52, %s43
      %p54 = scmp.ge.s32.totalorder %s53, 2
      %s55 = scalar_select %p54, 0, %s53
      %s56 = ssub.s32 %s43, %s55
      %s57 = ssub.s32 %s44, %s51
      %s58 = sor.u32 %s56, %s57
      %p59 = scmp.eq.s32.totalorder %s58, 0
      %s61 = sadd.s32 %s60, 1
      %s62 = scalar_select %p59, %s60, %s61
      %p65 = pneg %p59
      %p66 = scmp.eq.s32.totalorder %s36, 1
      %p67 = por %p65, %p66
      %p68 = scmp.ne.s32.totalorder %s60, %s63
      %p69 = scmp.eq.s32.totalorder %s36, 0
      %p70 = por %p68, %p69
      %p71 = scmp.ne.s32.totalorder %s60, %s63
      %p72 = scmp.eq.s32.totalorder %s41, 1
      %p73 = por %p71, %p72
      %p74 = scmp.ne.s32.totalorder %s63, %s64
      %p75 = scmp.eq.s32.totalorder %s41, 0
      %p76 = por %p74, %p75
      %p77 = scmp.ne.s32.totalorder %s63, %s64
      %p78 = scmp.eq.s32.totalorder %s42, 1
      %p79 = por %p77, %p78
      %p81 = scmp.ne.s32.totalorder %s64, %s80
      %p82 = scmp.eq.s32.totalorder %s42, 0
      %p83 = por %p81, %p82
      %s84 = ssub.s32 %s43, %s55
      %p85 = scmp.eq.s32.totalorder %s84, 0
      %s87 = sadd.s32 %s86, 1
      %s88 = scalar_select %p85, %s86, %s87
      %p91 = pneg %p85
      %p92 = scmp.eq.s32.totalorder %s36, 1
      %p93 = por %p91, %p92
      %p94 = scmp.ne.s32.totalorder %s86, %s89
      %p95 = scmp.eq.s32.totalorder %s36, 0
      %p96 = por %p94, %p95
      %p97 = scmp.ne.s32.totalorder %s86, %s89
      %p98 = scmp.eq.s32.totalorder %s41, 1
      %p99 = por %p97, %p98
      %p100 = scmp.ne.s32.totalorder %s89, %s90
      %p101 = scmp.eq.s32.totalorder %s41, 0
      %p102 = por %p100, %p101
      %p103 = scmp.ne.s32.totalorder %s89, %s90
      %p104 = scmp.eq.s32.totalorder %s42, 1
      %p105 = por %p103, %p104
      %p107 = scmp.ne.s32.totalorder %s90, %s106
      %p108 = scmp.eq.s32.totalorder %s42, 0
      %p109 = por %p107, %p108
      %s110 = ssub.s32 %s43, %s55
      %p111 = scmp.eq.s32.totalorder %s110, 0
      %s113 = sadd.s32 %s112, 1
      %s114 = scalar_select %p111, %s112, %s113
      %p117 = pneg %p111
      %p118 = scmp.eq.s32.totalorder %s36, 1
      %p119 = por %p117, %p118
      %p120 = scmp.ne.s32.totalorder %s112, %s115
      %p121 = scmp.eq.s32.totalorder %s36, 0
      %p122 = por %p120, %p121
      %p123 = scmp.ne.s32.totalorder %s112, %s115
      %p124 = scmp.eq.s32.totalorder %s41, 1
      %p125 = por %p123, %p124
      %p126 = scmp.ne.s32.totalorder %s115, %s116
      %p127 = scmp.eq.s32.totalorder %s41, 0
      %p128 = por %p126, %p127
      %p129 = scmp.ne.s32.totalorder %s115, %s116
      %p130 = scmp.eq.s32.totalorder %s42, 1
      %p131 = por %p129, %p130
      %p133 = scmp.ne.s32.totalorder %s116, %s132
      %p134 = scmp.eq.s32.totalorder %s42, 0
      %p135 = por %p133, %p134
      %s136 = ssub.s32 %s43, %s55
      %p137 = scmp.eq.s32.totalorder %s136, 0
      %s139 = sadd.s32 %s138, 1
      %s140 = scalar_select %p137, %s138, %s139
      %p143 = pneg %p137
      %p144 = scmp.eq.s32.totalorder %s36, 1
      %p145 = por %p143, %p144
      %p146 = scmp.ne.s32.totalorder %s138, %s141
      %p147 = scmp.eq.s32.totalorder %s36, 0
      %p148 = por %p146, %p147
      %p149 = scmp.ne.s32.totalorder %s138, %s141
      %p150 = scmp.eq.s32.totalorder %s41, 1
      %p151 = por %p149, %p150
      %p152 = scmp.ne.s32.totalorder %s141, %s142
      %p153 = scmp.eq.s32.totalorder %s41, 0
      %p154 = por %p152, %p153
      %p155 = scmp.ne.s32.totalorder %s141, %s142
      %p156 = scmp.eq.s32.totalorder %s42, 1
      %p157 = por %p155, %p156
      %p159 = scmp.ne.s32.totalorder %s142, %s158
      %p160 = scmp.eq.s32.totalorder %s42, 0
      %p161 = por %p159, %p160
      %s163 = sadd.s32 %s162, 1
      %p166 = scmp.eq.s32.totalorder %s36, 1
      %p167 = scmp.ne.s32.totalorder %s162, %s164
      %p168 = scmp.eq.s32.totalorder %s36, 0
      %p169 = por %p167, %p168
      %p170 = scmp.ne.s32.totalorder %s162, %s164
      %p171 = scmp.eq.s32.totalorder %s41, 1
      %p172 = por %p170, %p171
      %p173 = scmp.ne.s32.totalorder %s164, %s165
      %p174 = scmp.eq.s32.totalorder %s41, 0
      %p175 = por %p173, %p174
      %p176 = scmp.ne.s32.totalorder %s164, %s165
      %p177 = scmp.eq.s32.totalorder %s42, 1
      %p178 = por %p176, %p177
      %p180 = scmp.ne.s32.totalorder %s165, %s179
      %p181 = scmp.eq.s32.totalorder %s42, 0
      %p182 = por %p180, %p181
      %s184 = sadd.s32 %s183, 1
      %p187 = scmp.eq.s32.totalorder %s36, 1
      %p188 = scmp.ne.s32.totalorder %s183, %s185
      %p189 = scmp.eq.s32.totalorder %s36, 0
      %p190 = por %p188, %p189
      %p191 = scmp.ne.s32.totalorder %s183, %s185
      %p192 = scmp.eq.s32.totalorder %s41, 1
      %p193 = por %p191, %p192
      %p194 = scmp.ne.s32.totalorder %s185, %s186
      %p195 = scmp.eq.s32.totalorder %s41, 0
      %p196 = por %p194, %p195
      %p197 = scmp.ne.s32.totalorder %s185, %s186
      %p198 = scmp.eq.s32.totalorder %s42, 1
      %p199 = por %p197, %p198
      %p201 = scmp.ne.s32.totalorder %s186, %s200
      %p202 = scmp.eq.s32.totalorder %s42, 0
      %p203 = por %p201, %p202
      %s205 = sadd.s32 %s204, 1
      %p208 = scmp.eq.s32.totalorder %s36, 1
      %p209 = scmp.ne.s32.totalorder %s204, %s206
      %p210 = scmp.eq.s32.totalorder %s36, 0
      %p211 = por %p209, %p210
      %p212 = scmp.ne.s32.totalorder %s204, %s206
      %p213 = scmp.eq.s32.totalorder %s41, 1
      %p214 = por %p212, %p213
      %p215 = scmp.ne.s32.totalorder %s206, %s207
      %p216 = scmp.eq.s32.totalorder %s41, 0
      %p217 = por %p215, %p216
      %p218 = scmp.ne.s32.totalorder %s206, %s207
      %p219 = scmp.eq.s32.totalorder %s42, 1
      %p220 = por %p218, %p219
      %p222 = scmp.ne.s32.totalorder %s207, %s221
      %p223 = scmp.eq.s32.totalorder %s42, 0
      %p224 = por %p222, %p223
      %s226 = sadd.s32 %s225, 1
      %p229 = scmp.eq.s32.totalorder %s36, 1
      %p230 = scmp.ne.s32.totalorder %s225, %s227
      %p231 = scmp.eq.s32.totalorder %s36, 0
      %p232 = por %p230, %p231
      %p233 = scmp.ne.s32.totalorder %s225, %s227
      %p234 = scmp.eq.s32.totalorder %s41, 1
      %p235 = por %p233, %p234
      %p236 = scmp.ne.s32.totalorder %s227, %s228
      %p237 = scmp.eq.s32.totalorder %s41, 0
      %p238 = por %p236, %p237
      %p239 = scmp.ne.s32.totalorder %s227, %s228
      %p240 = scmp.eq.s32.totalorder %s42, 1
      %p241 = por %p239, %p240
      %p243 = scmp.ne.s32.totalorder %s228, %s242
      %p244 = scmp.eq.s32.totalorder %s42, 0
      %p245 = por %p243, %p244
      %s247 = sadd.s32 %s246, 1
      %p250 = scmp.eq.s32.totalorder %s36, 1
      %p251 = scmp.ne.s32.totalorder %s246, %s248
      %p252 = scmp.eq.s32.totalorder %s36, 0
      %p253 = por %p251, %p252
      %p254 = scmp.ne.s32.totalorder %s246, %s248
      %p255 = scmp.eq.s32.totalorder %s41, 1
      %p256 = por %p254, %p255
      %p257 = scmp.ne.s32.totalorder %s248, %s249
      %p258 = scmp.eq.s32.totalorder %s41, 0
      %p259 = por %p257, %p258
      %p260 = scmp.ne.s32.totalorder %s248, %s249
      %p261 = scmp.eq.s32.totalorder %s42, 1
      %p262 = por %p260, %p261
      %p264 = scmp.ne.s32.totalorder %s249, %s263
      %p265 = scmp.eq.s32.totalorder %s42, 0
      %p266 = por %p264, %p265
      %s268 = sadd.s32 %s267, 1
      %p271 = scmp.eq.s32.totalorder %s36, 1
      %p272 = scmp.ne.s32.totalorder %s267, %s269
      %p273 = scmp.eq.s32.totalorder %s36, 0
      %p274 = por %p272, %p273
      %p275 = scmp.ne.s32.totalorder %s267, %s269
      %p276 = scmp.eq.s32.totalorder %s41, 1
      %p277 = por %p275, %p276
      %p278 = scmp.ne.s32.totalorder %s269, %s270
      %p279 = scmp.eq.s32.totalorder %s41, 0
      %p280 = por %p278, %p279
      %p281 = scmp.ne.s32.totalorder %s269, %s270
      %p282 = scmp.eq.s32.totalorder %s42, 1
      %p283 = por %p281, %p282
      %p285 = scmp.ne.s32.totalorder %s270, %s284
      %p286 = scmp.eq.s32.totalorder %s42, 0
      %p287 = por %p285, %p286
      %s289 = sadd.s32 %s288, 1
      %p292 = scmp.eq.s32.totalorder %s36, 1
      %p293 = scmp.ne.s32.totalorder %s288, %s290
      %p294 = scmp.eq.s32.totalorder %s36, 0
      %p295 = por %p293, %p294
      %p296 = scmp.ne.s32.totalorder %s288, %s290
      %p297 = scmp.eq.s32.totalorder %s41, 1
      %p298 = por %p296, %p297
      %p299 = scmp.ne.s32.totalorder %s290, %s291
      %p300 = scmp.eq.s32.totalorder %s41, 0
      %p301 = por %p299, %p300
      %p302 = scmp.ne.s32.totalorder %s290, %s291
      %p303 = scmp.eq.s32.totalorder %s42, 1
      %p304 = por %p302, %p303
      %p306 = scmp.ne.s32.totalorder %s291, %s305
      %p307 = scmp.eq.s32.totalorder %s42, 0
      %p308 = por %p306, %p307
      %s310 = sadd.s32 %s309, 1
      %p313 = scmp.eq.s32.totalorder %s36, 1
      %p314 = scmp.ne.s32.totalorder %s309, %s311
      %p315 = scmp.eq.s32.totalorder %s36, 0
      %p316 = por %p314, %p315
      %p317 = scmp.ne.s32.totalorder %s309, %s311
      %p318 = scmp.eq.s32.totalorder %s41, 1
      %p319 = por %p317, %p318
      %p320 = scmp.ne.s32.totalorder %s311, %s312
      %p321 = scmp.eq.s32.totalorder %s41, 0
      %p322 = por %p320, %p321
      %p323 = scmp.ne.s32.totalorder %s311, %s312
      %p324 = scmp.eq.s32.totalorder %s42, 1
      %p325 = por %p323, %p324
      %p327 = scmp.ne.s32.totalorder %s312, %s326
      %p328 = scmp.eq.s32.totalorder %s42, 0
      %p329 = por %p327, %p328
      %s331 = sadd.s32 %s330, 1
      %p334 = scmp.eq.s32.totalorder %s36, 1
      %p335 = scmp.ne.s32.totalorder %s330, %s332
      %p336 = scmp.eq.s32.totalorder %s36, 0
      %p337 = por %p335, %p336
      %p338 = scmp.ne.s32.totalorder %s330, %s332
      %p339 = scmp.eq.s32.totalorder %s41, 1
      %p340 = por %p338, %p339
      %p341 = scmp.ne.s32.totalorder %s332, %s333
      %p342 = scmp.eq.s32.totalorder %s41, 0
      %p343 = por %p341, %p342
      %p344 = scmp.ne.s32.totalorder %s332, %s333
      %p345 = scmp.eq.s32.totalorder %s42, 1
      %p346 = por %p344, %p345
      %p348 = scmp.ne.s32.totalorder %s333, %s347
      %p349 = scmp.eq.s32.totalorder %s42, 0
      %p350 = por %p348, %p349
      %s352 = sadd.s32 %s351, 1
      %p355 = scmp.eq.s32.totalorder %s36, 1
      %p356 = scmp.ne.s32.totalorder %s351, %s353
      %p357 = scmp.eq.s32.totalorder %s36, 0
      %p358 = por %p356, %p357
      %p359 = scmp.ne.s32.totalorder %s351, %s353
      %p360 = scmp.eq.s32.totalorder %s41, 1
      %p361 = por %p359, %p360
      %p362 = scmp.ne.s32.totalorder %s353, %s354
      %p363 = scmp.eq.s32.totalorder %s41, 0
      %p364 = por %p362, %p363
      %p365 = scmp.ne.s32.totalorder %s353, %s354
      %p366 = scmp.eq.s32.totalorder %s42, 1
      %p367 = por %p365, %p366
      %p369 = scmp.ne.s32.totalorder %s354, %s368
      %p370 = scmp.eq.s32.totalorder %s42, 0
      %p371 = por %p369, %p370
      %s372 = ssub.s32 %s43, %s55
      %s373 = ssub.s32 %s44, %s51
      %s374 = sor.u32 %s372, %s373
      %p375 = scmp.eq.s32.totalorder %s374, 0
      %s377 = sadd.s32 %s376, 1
      %s378 = scalar_select %p375, %s376, %s377
      %p381 = pneg %p375
      %p382 = scmp.eq.s32.totalorder %s36, 1
      %p383 = por %p381, %p382
      %p384 = scmp.ne.s32.totalorder %s376, %s379
      %p385 = scmp.eq.s32.totalorder %s36, 0
      %p386 = por %p384, %p385
      %p387 = scmp.ne.s32.totalorder %s376, %s379
      %p388 = scmp.eq.s32.totalorder %s41, 1
      %p389 = por %p387, %p388
      %p390 = scmp.ne.s32.totalorder %s379, %s380
      %p391 = scmp.eq.s32.totalorder %s41, 0
      %p392 = por %p390, %p391
      %p393 = scmp.ne.s32.totalorder %s379, %s380
      %p394 = scmp.eq.s32.totalorder %s42, 1
      %p395 = por %p393, %p394
      %p397 = scmp.ne.s32.totalorder %s380, %s396
      %p398 = scmp.eq.s32.totalorder %s42, 0
      %p399 = por %p397, %p398
      %s400 = ssub.s32 %s43, %s55
      %s401 = ssub.s32 %s44, %s51
      %s402 = sor.u32 %s400, %s401
      %p403 = scmp.eq.s32.totalorder %s402, 0
      %s405 = sadd.s32 %s404, 1
      %s406 = scalar_select %p403, %s404, %s405
      %p409 = pneg %p403
      %p410 = scmp.eq.s32.totalorder %s36, 1
      %p411 = por %p409, %p410
      %p412 = scmp.ne.s32.totalorder %s404, %s407
      %p413 = scmp.eq.s32.totalorder %s36, 0
      %p414 = por %p412, %p413
      %p415 = scmp.ne.s32.totalorder %s404, %s407
      %p416 = scmp.eq.s32.totalorder %s41, 1
      %p417 = por %p415, %p416
      %p418 = scmp.ne.s32.totalorder %s407, %s408
      %p419 = scmp.eq.s32.totalorder %s41, 0
      %p420 = por %p418, %p419
      %p421 = scmp.ne.s32.totalorder %s407, %s408
      %p422 = scmp.eq.s32.totalorder %s42, 1
      %p423 = por %p421, %p422
      %p425 = scmp.ne.s32.totalorder %s408, %s424
      %p426 = scmp.eq.s32.totalorder %s42, 0
      %p427 = por %p425, %p426
      %p428 = scmp.le.s32.totalorder 1, %s36
      %p429 = scmp.lt.s32.totalorder %s36, 3
      %p430 = pnand %p428, %p429
      %p431 = pneg %p430
      // Predicated region
      $region9: #{tpu_custom_call.1} parent=5 // pred_check
        _
      $region10: #{tpu_custom_call.1} parent=5 // pred_check_branch
        %433 = sbr.rel (%p430) target = $region12
      $region11: #{tpu_custom_call.1} parent=5 // pred_region
        %s434 = ssub.s32 %s36, 1
        // Predicated region
        $region13: #{tpu_custom_call.1} parent=11 // pred_check
          %p435 = pneg %p175
        $region14: #{tpu_custom_call.1} parent=11 // pred_check_branch
          %437 = sbr.rel (%p435) target = $region16
        $region15: #{tpu_custom_call.1} parent=11 // pred_region
          %439 = vsyncadd [#allocation10], 0
          %s440 = sshll.u32 %s4, 4
          %s441 = int_to_ptr.hbm [resolvable:$true] %s440
          %s442 = sshll.u32 [#allocation9], 4
          %s443 = int_to_ptr.vmem [resolvable:$true] %s442
          %448 = dma.hbm_to_vmem [thread:$0]  %s441, 512, %s443, [#allocation10], 128, 128, 8
        $region16: #{tpu_custom_call.1} parent=11 // pred_fallthru
          _
        // Predicated region
        $region17: #{tpu_custom_call.1} parent=11 // pred_check
          %p449 = pneg %p196
        $region18: #{tpu_custom_call.1} parent=11 // pred_check_branch
          %451 = sbr.rel (%p449) target = $region20
        $region19: #{tpu_custom_call.1} parent=11 // pred_region
          _
        $region20: #{tpu_custom_call.1} parent=11 // pred_fallthru
          _
        // Predicated region
        $region21: #{tpu_custom_call.1} parent=11 // pred_check
          %p452 = pneg %p217
        $region22: #{tpu_custom_call.1} parent=11 // pred_check_branch
          %454 = sbr.rel (%p452) target = $region24
        $region23: #{tpu_custom_call.1} parent=11 // pred_region
          %456 = vsyncadd [#allocation10], 0
          %s457 = sshll.u32 %s6, 4
          %s458 = int_to_ptr.hbm [resolvable:$true] %s457
          %s459 = sshll.u32 [#allocation11], 4
          %s460 = int_to_ptr.vmem [resolvable:$true] %s459
          %465 = dma.hbm_to_vmem [thread:$0]  %s458, 512, %s460, [#allocation10], 128, 128, 8
        $region24: #{tpu_custom_call.1} parent=11 // pred_fallthru
          _
        // Predicated region
        $region25: #{tpu_custom_call.1} parent=11 // pred_check
          %p466 = pneg %p238
        $region26: #{tpu_custom_call.1} parent=11 // pred_check_branch
          %468 = sbr.rel (%p466) target = $region28
        $region27: #{tpu_custom_call.1} parent=11 // pred_region
          _
        $region28: #{tpu_custom_call.1} parent=11 // pred_fallthru
          _
        // Predicated region
        $region29: #{tpu_custom_call.1} parent=11 // pred_check
          %p469 = pneg %p259
        $region30: #{tpu_custom_call.1} parent=11 // pred_check_branch
          %471 = sbr.rel (%p469) target = $region32
        $region31: #{tpu_custom_call.1} parent=11 // pred_region
          %473 = vsyncadd [#allocation13], 0
          %s474 = sshll.u32 %s8, 4
          %s475 = int_to_ptr.hbm [resolvable:$true] %s474
          %s476 = sshll.u32 [#allocation12], 4
          %s477 = int_to_ptr.vmem [resolvable:$true] %s476
          %482 = dma.hbm_to_vmem [thread:$0]  %s475, 512, %s477, [#allocation13], 128, 128, 8
        $region32: #{tpu_custom_call.1} parent=11 // pred_fallthru
          _
        // Predicated region
        $region33: #{tpu_custom_call.1} parent=11 // pred_check
          %p483 = pneg %p280
        $region34: #{tpu_custom_call.1} parent=11 // pred_check_branch
          %485 = sbr.rel (%p483) target = $region36
        $region35: #{tpu_custom_call.1} parent=11 // pred_region
          _
        $region36: #{tpu_custom_call.1} parent=11 // pred_fallthru
          _
        // Predicated region
        $region37: #{tpu_custom_call.1} parent=11 // pred_check
          %p486 = pneg %p301
        $region38: #{tpu_custom_call.1} parent=11 // pred_check_branch
          %488 = sbr.rel (%p486) target = $region40
        $region39: #{tpu_custom_call.1} parent=11 // pred_region
          %490 = vsyncadd [#allocation13], 0
          %s491 = sshll.u32 %s10, 4
          %s492 = int_to_ptr.hbm [resolvable:$true] %s491
          %s493 = sshll.u32 [#allocation14], 4
          %s494 = int_to_ptr.vmem [resolvable:$true] %s493
          %499 = dma.hbm_to_vmem [thread:$0]  %s492, 512, %s494, [#allocation13], 128, 128, 8
        $region40: #{tpu_custom_call.1} parent=11 // pred_fallthru
          _
        // Predicated region
        $region41: #{tpu_custom_call.1} parent=11 // pred_check
          %p500 = pneg %p322
        $region42: #{tpu_custom_call.1} parent=11 // pred_check_branch
          %502 = sbr.rel (%p500) target = $region44
        $region43: #{tpu_custom_call.1} parent=11 // pred_region
          _
        $region44: #{tpu_custom_call.1} parent=11 // pred_fallthru
          _
        // Predicated region
        $region45: #{tpu_custom_call.1} parent=11 // pred_check
          %p503 = pneg %p343
        $region46: #{tpu_custom_call.1} parent=11 // pred_check_branch
          %505 = sbr.rel (%p503) target = $region48
        $region47: #{tpu_custom_call.1} parent=11 // pred_region
          _
        $region48: #{tpu_custom_call.1} parent=11 // pred_fallthru
          _
        // Predicated region
        $region49: #{tpu_custom_call.1} parent=11 // pred_check
          %p506 = pneg %p364
        $region50: #{tpu_custom_call.1} parent=11 // pred_check_branch
          %508 = sbr.rel (%p506) target = $region52
        $region51: #{tpu_custom_call.1} parent=11 // pred_region
          _
        $region52: #{tpu_custom_call.1} parent=11 // pred_fallthru
          _
      $region12: #{tpu_custom_call.1} parent=5 // pred_fallthru
        _
      %p509 = scmp.lt.s32.totalorder %s36, 2
      // Predicated region
      $region53: #{tpu_custom_call.1} parent=5 // pred_check
        %p510 = pneg %p509
      $region54: #{tpu_custom_call.1} parent=5 // pred_check_branch
        %512 = sbr.rel (%p510) target = $region56
      $region55: #{tpu_custom_call.1} parent=5 // pred_region
        // Predicated region
        $region57: #{tpu_custom_call.1} parent=55 // pred_check
          %p513 = pneg %p70
        $region58: #{tpu_custom_call.1} parent=55 // pred_check_branch
          %515 = sbr.rel (%p513) target = $region60
        $region59: #{tpu_custom_call.1} parent=55 // pred_region
          %s516 = sand.u32 %s60, 1
          %s517 = scalar_lea.sflag [#allocation4], %s516
          %s518 = sand.u32 %s60, 1
          %s519 = smul.addr %s518, 8
          %s520 = scalar_lea.vmem [#allocation3], %s519
          %522 = vsyncadd %s517, 0
          %s523 = sadd.s32 %s44, %s43
          %s524 = smul.addr %s523, 8
          %s525 = scalar_lea.hbm %s0, %s524
          %s527 = sshll.u32 %s525, 4
          %s528 = int_to_ptr.hbm [resolvable:$true] %s527
          %s529 = sshll.u32 %s520, 4
          %s530 = int_to_ptr.vmem [resolvable:$true] %s529
          %532 = dma.hbm_to_vmem [thread:$0]  %s528, 128, %s530, %s517
        $region60: #{tpu_custom_call.1} parent=55 // pred_fallthru
          _
        // Predicated region
        $region61: #{tpu_custom_call.1} parent=55 // pred_check
          %p533 = pneg %p96
        $region62: #{tpu_custom_call.1} parent=55 // pred_check_branch
          %535 = sbr.rel (%p533) target = $region64
        $region63: #{tpu_custom_call.1} parent=55 // pred_region
          %s536 = sand.u32 %s36, 1
          %s537 = scalar_lea.sflag [#allocation7], %s536
          %s538 = sand.u32 %s86, 1
          %s539 = smul.addr %s538, 8
          %s540 = scalar_lea.vmem [#allocation6], %s539
          %542 = vsyncadd %s537, 0
          %s543 = smul.addr %s43, 8
          %s544 = scalar_lea.hbm %s1, %s543
          %s546 = sshll.u32 %s544, 4
          %s547 = int_to_ptr.hbm [resolvable:$true] %s546
          %s548 = sshll.u32 %s540, 4
          %s549 = int_to_ptr.vmem [resolvable:$true] %s548
          %551 = dma.hbm_to_vmem [thread:$0]  %s547, 128, %s549, %s537
        $region64: #{tpu_custom_call.1} parent=55 // pred_fallthru
          _
        // Predicated region
        $region65: #{tpu_custom_call.1} parent=55 // pred_check
          %p552 = pneg %p122
        $region66: #{tpu_custom_call.1} parent=55 // pred_check_branch
          %554 = sbr.rel (%p552) target = $region68
        $region67: #{tpu_custom_call.1} parent=55 // pred_region
          %s555 = sand.u32 %s36, 1
          %s556 = scalar_lea.sflag [#allocation7], %s555
          %s557 = sand.u32 %s112, 1
          %s558 = smul.addr %s557, 8
          %s559 = scalar_lea.vmem [#allocation8], %s558
          %561 = vsyncadd %s556, 0
          %s562 = smul.addr %s43, 8
          %s563 = scalar_lea.hbm %s2, %s562
          %s565 = sshll.u32 %s563, 4
          %s566 = int_to_ptr.hbm [resolvable:$true] %s565
          %s567 = sshll.u32 %s559, 4
          %s568 = int_to_ptr.vmem [resolvable:$true] %s567
          %570 = dma.hbm_to_vmem [thread:$0]  %s566, 128, %s568, %s556
        $region68: #{tpu_custom_call.1} parent=55 // pred_fallthru
          _
        // Predicated region
        $region69: #{tpu_custom_call.1} parent=55 // pred_check
          %p571 = pneg %p148
        $region70: #{tpu_custom_call.1} parent=55 // pred_check_branch
          %573 = sbr.rel (%p571) target = $region72
        $region71: #{tpu_custom_call.1} parent=55 // pred_region
          %p574 = scmp.lt.s32.totalorder %s43, 1
          %s575 = scalar_select %p574, %s43, 1
          %s576 = scalar_lea.vmem %s3, %s575
        $region72: #{tpu_custom_call.1} parent=55 // pred_fallthru
          _
      $region56: #{tpu_custom_call.1} parent=5 // pred_fallthru
        _
      %p577 = scmp.le.s32.totalorder 1, %s36
      %p578 = scmp.lt.s32.totalorder %s36, 3
      %p579 = pnand %p577, %p578
      %p580 = pneg %p579
      // Predicated region
      $region73: #{tpu_custom_call.1} parent=5 // pred_check
        _
      $region74: #{tpu_custom_call.1} parent=5 // pred_check_branch
        %582 = sbr.rel (%p579) target = $region76
      $region75: #{tpu_custom_call.1} parent=5 // pred_region
        %s583 = ssub.s32 %s36, 1
        %s584 = sand.u32 %s63, 1
        %s585 = scalar_lea.sflag [#allocation4], %s584
        %s586 = sand.u32 %s63, 1
        %s587 = smul.addr %s586, 8
        %s588 = scalar_lea.vmem [#allocation3], %s587
        // Predicated region
        $region77: #{tpu_custom_call.1} parent=75 // pred_check
          %p589 = pneg %p76
        $region78: #{tpu_custom_call.1} parent=75 // pred_check_branch
          %591 = sbr.rel (%p589) target = $region80
        $region79: #{tpu_custom_call.1} parent=75 // pred_region
          %593 = dma.done %s585, 128
        $region80: #{tpu_custom_call.1} parent=75 // pred_fallthru
          _
        %s594 = sand.u32 %s41, 1
        %s595 = scalar_lea.sflag [#allocation7], %s594
        %s596 = sand.u32 %s89, 1
        %s597 = smul.addr %s596, 8
        %s598 = scalar_lea.vmem [#allocation6], %s597
        // Predicated region
        $region81: #{tpu_custom_call.1} parent=75 // pred_check
          %p599 = pneg %p102
        $region82: #{tpu_custom_call.1} parent=75 // pred_check_branch
          %601 = sbr.rel (%p599) target = $region84
        $region83: #{tpu_custom_call.1} parent=75 // pred_region
          %603 = dma.done %s595, 128
        $region84: #{tpu_custom_call.1} parent=75 // pred_fallthru
          _
        %s604 = sand.u32 %s41, 1
        %s605 = scalar_lea.sflag [#allocation7], %s604
        %s606 = sand.u32 %s115, 1
        %s607 = smul.addr %s606, 8
        %s608 = scalar_lea.vmem [#allocation8], %s607
        // Predicated region
        $region85: #{tpu_custom_call.1} parent=75 // pred_check
          %p609 = pneg %p128
        $region86: #{tpu_custom_call.1} parent=75 // pred_check_branch
          %611 = sbr.rel (%p609) target = $region88
        $region87: #{tpu_custom_call.1} parent=75 // pred_region
          %613 = dma.done %s605, 128
        $region88: #{tpu_custom_call.1} parent=75 // pred_fallthru
          _
        // Predicated region
        $region89: #{tpu_custom_call.1} parent=75 // pred_check
          %p614 = pneg %p175
        $region90: #{tpu_custom_call.1} parent=75 // pred_check_branch
          %616 = sbr.rel (%p614) target = $region92
        $region91: #{tpu_custom_call.1} parent=75 // pred_region
          %618 = dma.done [#allocation10], 512
        $region92: #{tpu_custom_call.1} parent=75 // pred_fallthru
          _
        // Predicated region
        $region93: #{tpu_custom_call.1} parent=75 // pred_check
          %p619 = pneg %p217
        $region94: #{tpu_custom_call.1} parent=75 // pred_check_branch
          %621 = sbr.rel (%p619) target = $region96
        $region95: #{tpu_custom_call.1} parent=75 // pred_region
          %623 = dma.done [#allocation10], 512
        $region96: #{tpu_custom_call.1} parent=75 // pred_fallthru
          _
        // Predicated region
        $region97: #{tpu_custom_call.1} parent=75 // pred_check
          %p624 = pneg %p259
        $region98: #{tpu_custom_call.1} parent=75 // pred_check_branch
          %626 = sbr.rel (%p624) target = $region100
        $region99: #{tpu_custom_call.1} parent=75 // pred_region
          %628 = dma.done [#allocation13], 512
        $region100: #{tpu_custom_call.1} parent=75 // pred_fallthru
          _
        // Predicated region
        $region101: #{tpu_custom_call.1} parent=75 // pred_check
          %p629 = pneg %p301
        $region102: #{tpu_custom_call.1} parent=75 // pred_check_branch
          %631 = sbr.rel (%p629) target = $region104
        $region103: #{tpu_custom_call.1} parent=75 // pred_region
          %633 = dma.done [#allocation13], 512
        $region104: #{tpu_custom_call.1} parent=75 // pred_fallthru
          _
        %s634 = sand.u32 %s63, 1
        %s635 = scalar_lea.sflag [#allocation4], %s634
        %s636 = sand.u32 %s63, 1
        %s637 = smul.addr %s636, 8
        %s638 = scalar_lea.vmem [#allocation3], %s637
        %p639 = pneg %p76
        %p640 = pneg %p73
        %s641 = sand.u32 %s41, 1
        %s642 = scalar_lea.sflag [#allocation7], %s641
        %s643 = sand.u32 %s89, 1
        %s644 = smul.addr %s643, 8
        %s645 = scalar_lea.vmem [#allocation6], %s644
        %p646 = pneg %p102
        %p647 = pneg %p99
        %s648 = sand.u32 %s41, 1
        %s649 = scalar_lea.sflag [#allocation7], %s648
        %s650 = sand.u32 %s115, 1
        %s651 = smul.addr %s650, 8
        %s652 = scalar_lea.vmem [#allocation8], %s651
        %p653 = pneg %p128
        %p654 = pneg %p125
        %p655 = scmp.lt.s32.totalorder %s45, 1
        %s656 = scalar_select %p655, %s45, 1
        %s657 = scalar_lea.vmem %s3, %s656
        %p658 = pneg %p154
        %p659 = pneg %p151
        %p660 = pneg %p175
        %p661 = pneg %p172
        %p662 = pneg %p196
        %p663 = pneg %p193
        %p664 = pneg %p217
        %p665 = pneg %p214
        %p666 = pneg %p238
        %p667 = pneg %p235
        %p668 = pneg %p259
        %p669 = pneg %p256
        %p670 = pneg %p280
        %p671 = pneg %p277
        %p672 = pneg %p301
        %p673 = pneg %p298
        %p674 = pneg %p322
        %p675 = pneg %p319
        %p676 = pneg %p343
        %p677 = pneg %p340
        %p678 = pneg %p364
        %p679 = pneg %p361
        %p680 = pneg %p392
        %p681 = pneg %p389
        %s682 = sand.u32 %s379, 1
        %s683 = scalar_lea.sflag [#allocation5], %s682
        %s684 = sand.u32 %s379, 1
        %s685 = smul.addr %s684, 8
        %s686 = scalar_lea.vmem [#allocation15], %s685
        %p687 = pneg %p420
        %p688 = pneg %p417
        %s689 = sand.u32 %s407, 1
        %s690 = scalar_lea.sflag [#allocation17], %s689
        %s691 = sand.u32 %s407, 1
        %s692 = smul.addr %s691, 32
        %s693 = scalar_lea.vmem [#allocation16], %s692
        %p694 = scmp.lt.s32.totalorder %s45, 1
        %s695 = scalar_select %p694, %s45, 1
        %s696 = scalar_lea.vmem %s3, %s695
        %v697 = vld [vmem:[%s588] sm:$0xff]
        %v698 = vld [vmem:[%s598] sm:$0xff]
        %v699 = vld [vmem:[%s608] sm:$0xff]
        %v700 = vld [vmem:[#allocation9] sm:$0xff]
        %v701 = vld [vmem:[#allocation9 + $0x8] sm:$0xff]
        %v702 = vld [vmem:[#allocation9 + $0x10] sm:$0xff]
        %v703 = vld [vmem:[#allocation9 + $0x18] sm:$0xff]
        %v704 = vld [vmem:[%s5] sm:$0x1]
        %v706 = vperm.slane %v704, 0
        %vm708 = vcmask 261120
        %v710 = vsel %vm708, %v697, 0
        %v713 = vsel %vm708, %v700, 0
        %v716 = vsel %vm708, %v701, 0
        %v719 = vsel %vm708, %v702, 0
        %v722 = vsel %vm708, %v703, 0
        %724 = vmatpush.xpose.msra.mxu0 0.0
        %725 = vmatpush.xpose.msra.mxu0 0.0
        %726 = vmatpush.xpose.msra.mxu0 0.0
        %727 = vmatpush.xpose.msra.mxu0 0.0
        %728 = vmatpush.xpose.msra.mxu0 0.0
        %729 = vmatpush.xpose.msra.mxu0 0.0
        %730 = vmatpush.xpose.msra.mxu0 0.0
        %731 = vmatpush.xpose.msra.mxu0 0.0
        %732 = vmatpush.xpose.msra.mxu0 0.0
        %733 = vmatpush.xpose.msra.mxu0 0.0
        %734 = vmatpush.xpose.msra.mxu0 0.0
        %735 = vmatpush.xpose.msra.mxu0 0.0
        %736 = vmatpush.xpose.msra.mxu0 %v722
        %737 = vmatpush.xpose.msra.mxu0 %v719
        %738 = vmatpush.xpose.msra.mxu0 %v716
        %739 = vmatpush.xpose.msra.mxu0 %v713
        %740 = vmatmul.f32.gmra.mxu0 %v710
        %v741 = vpop.f32.mrf.mxu0
        %v742 = vadd.f32 %v706, %v741
        %743 = vdwg.mxu0
        %v744 = vld [vmem:[#allocation11] sm:$0xff]
        %v745 = vld [vmem:[#allocation11 + $0x8] sm:$0xff]
        %v746 = vld [vmem:[#allocation11 + $0x10] sm:$0xff]
        %v747 = vld [vmem:[#allocation11 + $0x18] sm:$0xff]
        %v748 = vld [vmem:[%s7] sm:$0x1]
        %v750 = vperm.slane %v748, 0
        %v753 = vsel %vm708, %v698, 0
        %v756 = vsel %vm708, %v744, 0
        %v759 = vsel %vm708, %v745, 0
        %v762 = vsel %vm708, %v746, 0
        %v765 = vsel %vm708, %v747, 0
        %767 = vmatpush.xpose.msra.mxu0 0.0
        %768 = vmatpush.xpose.msra.mxu0 0.0
        %769 = vmatpush.xpose.msra.mxu0 0.0
        %770 = vmatpush.xpose.msra.mxu0 0.0
        %771 = vmatpush.xpose.msra.mxu0 0.0
        %772 = vmatpush.xpose.msra.mxu0 0.0
        %773 = vmatpush.xpose.msra.mxu0 0.0
        %774 = vmatpush.xpose.msra.mxu0 0.0
        %775 = vmatpush.xpose.msra.mxu0 0.0
        %776 = vmatpush.xpose.msra.mxu0 0.0
        %777 = vmatpush.xpose.msra.mxu0 0.0
        %778 = vmatpush.xpose.msra.mxu0 0.0
        %779 = vmatpush.xpose.msra.mxu0 %v765
        %780 = vmatpush.xpose.msra.mxu0 %v762
        %781 = vmatpush.xpose.msra.mxu0 %v759
        %782 = vmatpush.xpose.msra.mxu0 %v756
        %783 = vmatmul.f32.gmra.mxu0 %v753
        %v784 = vpop.f32.mrf.mxu0
        %v785 = vadd.f32 %v750, %v784
        %786 = vdwg.mxu0
        %v787 = vld [vmem:[#allocation12] sm:$0xff]
        %v788 = vld [vmem:[#allocation12 + $0x8] sm:$0xff]
        %v789 = vld [vmem:[#allocation12 + $0x10] sm:$0xff]
        %v790 = vld [vmem:[#allocation12 + $0x18] sm:$0xff]
        %v791 = vld [vmem:[%s9] sm:$0x1]
        %v793 = vperm.slane %v791, 0
        %v796 = vsel %vm708, %v699, 0
        %v799 = vsel %vm708, %v787, 0
        %v802 = vsel %vm708, %v788, 0
        %v805 = vsel %vm708, %v789, 0
        %v808 = vsel %vm708, %v790, 0
        %810 = vmatpush.xpose.msra.mxu0 0.0
        %811 = vmatpush.xpose.msra.mxu0 0.0
        %812 = vmatpush.xpose.msra.mxu0 0.0
        %813 = vmatpush.xpose.msra.mxu0 0.0
        %814 = vmatpush.xpose.msra.mxu0 0.0
        %815 = vmatpush.xpose.msra.mxu0 0.0
        %816 = vmatpush.xpose.msra.mxu0 0.0
        %817 = vmatpush.xpose.msra.mxu0 0.0
        %818 = vmatpush.xpose.msra.mxu0 0.0
        %819 = vmatpush.xpose.msra.mxu0 0.0
        %820 = vmatpush.xpose.msra.mxu0 0.0
        %821 = vmatpush.xpose.msra.mxu0 0.0
        %822 = vmatpush.xpose.msra.mxu0 %v808
        %823 = vmatpush.xpose.msra.mxu0 %v805
        %824 = vmatpush.xpose.msra.mxu0 %v802
        %825 = vmatpush.xpose.msra.mxu0 %v799
        %826 = vmatmul.f32.gmra.mxu0 %v796
        %v827 = vpop.f32.mrf.mxu0
        %v828 = vadd.f32 %v793, %v827
        %829 = vdwg.mxu0
        %vm830 = vcmask 64512
        %v832 = vsel %vm830, %v742, 0
        %v835 = vsel %vm830, %v785, 0
        %837 = vmatpush.xpose.msra.mxu0 0.0
        %838 = vmatpush.xpose.msra.mxu0 0.0
        %839 = vmatpush.xpose.msra.mxu0 0.0
        %840 = vmatpush.xpose.msra.mxu0 0.0
        %841 = vmatpush.xpose.msra.mxu0 0.0
        %842 = vmatpush.xpose.msra.mxu0 0.0
        %843 = vmatpush.xpose.msra.mxu0 0.0
        %844 = vmatpush.xpose.msra.mxu0 0.0
        %845 = vmatpush.xpose.msra.mxu0 0.0
        %846 = vmatpush.xpose.msra.mxu0 0.0
        %847 = vmatpush.xpose.msra.mxu0 0.0
        %848 = vmatpush.xpose.msra.mxu0 0.0
        %849 = vmatpush.xpose.msra.mxu0 0.0
        %850 = vmatpush.xpose.msra.mxu0 0.0
        %851 = vmatpush.xpose.msra.mxu0 0.0
        %852 = vmatpush.xpose.msra.mxu0 %v835
        %853 = vmatmul.f32.gmra.mxu0 %v832
        %v854 = vpop.f32.mrf.mxu0
        %v855 = vadd.f32 0.0, %v854
        %856 = vdwg.mxu0
        %v857 = vmul.f32 %v855, 0.35355338
        %v858 = vld [vmem:[%s696] sm:$0x1]
        %v860 = vperm.slane %v858, 0
        %v862 = vadd.f32 %v857, %v860
        %v863 = vsel %vm830, %v862, -inf
        %864 = vmax.xlane.f32.xlu0 %v863
        %v865 = vpop.xlane.xlu0 %864
        %v866 = vsub.f32 %v862, %v865
        %v867 = vmul.f32 %v866, 1.442695
        %v868 = vpow.pop %v867
        %v869 = vsel %vm830, %v868, 0.0
        %870 = vadd.xlane.f32.xlu0 %v869
        %v871 = vpop.xlane.xlu0 %870
        %v872 = vrcp.pop %v871
        %v873 = vmul.f32 %v868, %v872
        %874 = vst.msk [vmem:[%s693] sm:$0xff] %vm830, %v873
        %v876 = vsel %vm830, %v873, 0
        %878 = vmatpush.msra.mxu0 0.0
        %879 = vmatpush.msra.mxu0 0.0
        %880 = vmatpush.msra.mxu0 0.0
        %881 = vmatpush.msra.mxu0 0.0
        %882 = vmatpush.msra.mxu0 0.0
        %883 = vmatpush.msra.mxu0 0.0
        %884 = vmatpush.msra.mxu0 0.0
        %885 = vmatpush.msra.mxu0 0.0
        %886 = vmatpush.msra.mxu0 0.0
        %887 = vmatpush.msra.mxu0 0.0
        %888 = vmatpush.msra.mxu0 0.0
        %889 = vmatpush.msra.mxu0 0.0
        %890 = vmatpush.msra.mxu0 0.0
        %891 = vmatpush.msra.mxu0 0.0
        %892 = vmatpush.msra.mxu0 0.0
        %893 = vmatpush.msra.mxu0 %v828
        %894 = vmatmul.f32.gmra.mxu0 %v876
        %v895 = vpop.f32.mrf.mxu0
        %v896 = vadd.f32 0.0, %v895
        %897 = vdwg.mxu0
        %898 = vst.msk [vmem:[#allocation2] sm:$0xff] %vm830, %v896
        %899 = vrot.lane.b32.xlu0 %v742, 120
        %v900 = vpop.permute.xlu0 %899
        %901 = vrot.lane.b32.xlu0 %v785, 120
        %v902 = vpop.permute.xlu0 %901
        %v903 = vsel %vm830, %v900, 0
        %v905 = vsel %vm830, %v902, 0
        %907 = vmatpush.xpose.msra.mxu0 0.0
        %908 = vmatpush.xpose.msra.mxu0 0.0
        %909 = vmatpush.xpose.msra.mxu0 0.0
        %910 = vmatpush.xpose.msra.mxu0 0.0
        %911 = vmatpush.xpose.msra.mxu0 0.0
        %912 = vmatpush.xpose.msra.mxu0 0.0
        %913 = vmatpush.xpose.msra.mxu0 0.0
        %914 = vmatpush.xpose.msra.mxu0 0.0
        %915 = vmatpush.xpose.msra.mxu0 0.0
        %916 = vmatpush.xpose.msra.mxu0 0.0
        %917 = vmatpush.xpose.msra.mxu0 0.0
        %918 = vmatpush.xpose.msra.mxu0 0.0
        %919 = vmatpush.xpose.msra.mxu0 0.0
        %920 = vmatpush.xpose.msra.mxu0 0.0
        %921 = vmatpush.xpose.msra.mxu0 0.0
        %922 = vmatpush.xpose.msra.mxu0 %v905
        %923 = vmatmul.f32.gmra.mxu0 %v903
        %v924 = vpop.f32.mrf.mxu0
        %v925 = vadd.f32 0.0, %v924
        %926 = vdwg.mxu0
        %v927 = vmul.f32 %v925, 0.35355338
        %v928 = vld [vmem:[%s696] sm:$0x1]
        %v930 = vperm.slane %v928, 0
        %v932 = vadd.f32 %v927, %v930
        %v933 = vsel %vm830, %v932, -inf
        %934 = vmax.xlane.f32.xlu0 %v933
        %v935 = vpop.xlane.xlu0 %934
        %v936 = vsub.f32 %v932, %v935
        %v937 = vmul.f32 %v936, 1.442695
        %v938 = vpow.pop %v937
        %v939 = vsel %vm830, %v938, 0.0
        %940 = vadd.xlane.f32.xlu0 %v939
        %v941 = vpop.xlane.xlu0 %940
        %v942 = vrcp.pop %v941
        %v943 = vmul.f32 %v938, %v942
        %s944 = scalar_lea.vmem %s693, 8 [#allocation16]
        %945 = vst.msk [vmem:[%s944] sm:$0xff] %vm830, %v943
        %947 = vrot.lane.b32.xlu0 %v828, 120
        %v948 = vpop.permute.xlu0 %947
        %v951 = vsel %vm830, %v943, 0
        %953 = vmatpush.msra.mxu0 0.0
        %954 = vmatpush.msra.mxu0 0.0
        %955 = vmatpush.msra.mxu0 0.0
        %956 = vmatpush.msra.mxu0 0.0
        %957 = vmatpush.msra.mxu0 0.0
        %958 = vmatpush.msra.mxu0 0.0
        %959 = vmatpush.msra.mxu0 0.0
        %960 = vmatpush.msra.mxu0 0.0
        %961 = vmatpush.msra.mxu0 0.0
        %962 = vmatpush.msra.mxu0 0.0
        %963 = vmatpush.msra.mxu0 0.0
        %964 = vmatpush.msra.mxu0 0.0
        %965 = vmatpush.msra.mxu0 0.0
        %966 = vmatpush.msra.mxu0 0.0
        %967 = vmatpush.msra.mxu0 0.0
        %968 = vmatpush.msra.mxu0 %v948
        %969 = vmatmul.f32.gmra.mxu0 %v951
        %v970 = vpop.f32.mrf.mxu0
        %v971 = vadd.f32 0.0, %v970
        %972 = vdwg.mxu0
        %974 = vrot.lane.b32.xlu0 %v971, 8
        %v975 = vpop.permute.xlu0 %974
        %vm977 = vcmask 130112
        %978 = vst.msk [vmem:[#allocation2] sm:$0xff] %vm977, %v975
        %979 = vrot.lane.b32.xlu0 %v742, 112
        %v980 = vpop.permute.xlu0 %979
        %981 = vrot.lane.b32.xlu0 %v785, 112
        %v982 = vpop.permute.xlu0 %981
        %v983 = vsel %vm830, %v980, 0
        %v985 = vsel %vm830, %v982, 0
        %987 = vmatpush.xpose.msra.mxu0 0.0
        %988 = vmatpush.xpose.msra.mxu0 0.0
        %989 = vmatpush.xpose.msra.mxu0 0.0
        %990 = vmatpush.xpose.msra.mxu0 0.0
        %991 = vmatpush.xpose.msra.mxu0 0.0
        %992 = vmatpush.xpose.msra.mxu0 0.0
        %993 = vmatpush.xpose.msra.mxu0 0.0
        %994 = vmatpush.xpose.msra.mxu0 0.0
        %995 = vmatpush.xpose.msra.mxu0 0.0
        %996 = vmatpush.xpose.msra.mxu0 0.0
        %997 = vmatpush.xpose.msra.mxu0 0.0
        %998 = vmatpush.xpose.msra.mxu0 0.0
        %999 = vmatpush.xpose.msra.mxu0 0.0
        %1000 = vmatpush.xpose.msra.mxu0 0.0
        %1001 = vmatpush.xpose.msra.mxu0 0.0
        %1002 = vmatpush.xpose.msra.mxu0 %v985
        %1003 = vmatmul.f32.gmra.mxu0 %v983
        %v1004 = vpop.f32.mrf.mxu0
        %v1005 = vadd.f32 0.0, %v1004
        %1006 = vdwg.mxu0
        %v1007 = vmul.f32 %v1005, 0.35355338
        %v1008 = vld [vmem:[%s696] sm:$0x1]
        %v1010 = vperm.slane %v1008, 0
        %v1012 = vadd.f32 %v1007, %v1010
        %v1013 = vsel %vm830, %v1012, -inf
        %1014 = vmax.xlane.f32.xlu0 %v1013
        %v1015 = vpop.xlane.xlu0 %1014
        %v1016 = vsub.f32 %v1012, %v1015
        %v1017 = vmul.f32 %v1016, 1.442695
        %v1018 = vpow.pop %v1017
        %v1019 = vsel %vm830, %v1018, 0.0
        %1020 = vadd.xlane.f32.xlu0 %v1019
        %v1021 = vpop.xlane.xlu0 %1020
        %v1022 = vrcp.pop %v1021
        %v1023 = vmul.f32 %v1018, %v1022
        %s1024 = scalar_lea.vmem %s693, 16 [#allocation16]
        %1025 = vst.msk [vmem:[%s1024] sm:$0xff] %vm830, %v1023
        %1026 = vrot.lane.b32.xlu0 %v828, 112
        %v1027 = vpop.permute.xlu0 %1026
        %v1030 = vsel %vm830, %v1023, 0
        %1032 = vmatpush.msra.mxu0 0.0
        %1033 = vmatpush.msra.mxu0 0.0
        %1034 = vmatpush.msra.mxu0 0.0
        %1035 = vmatpush.msra.mxu0 0.0
        %1036 = vmatpush.msra.mxu0 0.0
        %1037 = vmatpush.msra.mxu0 0.0
        %1038 = vmatpush.msra.mxu0 0.0
        %1039 = vmatpush.msra.mxu0 0.0
        %1040 = vmatpush.msra.mxu0 0.0
        %1041 = vmatpush.msra.mxu0 0.0
        %1042 = vmatpush.msra.mxu0 0.0
        %1043 = vmatpush.msra.mxu0 0.0
        %1044 = vmatpush.msra.mxu0 0.0
        %1045 = vmatpush.msra.mxu0 0.0
        %1046 = vmatpush.msra.mxu0 0.0
        %1047 = vmatpush.msra.mxu0 %v1027
        %1048 = vmatmul.f32.gmra.mxu0 %v1030
        %v1049 = vpop.f32.mrf.mxu0
        %v1050 = vadd.f32 0.0, %v1049
        %1051 = vdwg.mxu0
        %1053 = vrot.lane.b32.xlu0 %v1050, 16
        %v1054 = vpop.permute.xlu0 %1053
        %vm1056 = vcmask 195712
        %1057 = vst.msk [vmem:[#allocation2] sm:$0xff] %vm1056, %v1054
        %1058 = vrot.lane.b32.xlu0 %v742, 104
        %v1059 = vpop.permute.xlu0 %1058
        %1060 = vrot.lane.b32.xlu0 %v785, 104
        %v1061 = vpop.permute.xlu0 %1060
        %v1062 = vsel %vm830, %v1059, 0
        %v1064 = vsel %vm830, %v1061, 0
        %1066 = vmatpush.xpose.msra.mxu0 0.0
        %1067 = vmatpush.xpose.msra.mxu0 0.0
        %1068 = vmatpush.xpose.msra.mxu0 0.0
        %1069 = vmatpush.xpose.msra.mxu0 0.0
        %1070 = vmatpush.xpose.msra.mxu0 0.0
        %1071 = vmatpush.xpose.msra.mxu0 0.0
        %1072 = vmatpush.xpose.msra.mxu0 0.0
        %1073 = vmatpush.xpose.msra.mxu0 0.0
        %1074 = vmatpush.xpose.msra.mxu0 0.0
        %1075 = vmatpush.xpose.msra.mxu0 0.0
        %1076 = vmatpush.xpose.msra.mxu0 0.0
        %1077 = vmatpush.xpose.msra.mxu0 0.0
        %1078 = vmatpush.xpose.msra.mxu0 0.0
        %1079 = vmatpush.xpose.msra.mxu0 0.0
        %1080 = vmatpush.xpose.msra.mxu0 0.0
        %1081 = vmatpush.xpose.msra.mxu0 %v1064
        %1082 = vmatmul.f32.gmra.mxu0 %v1062
        %v1083 = vpop.f32.mrf.mxu0
        %v1084 = vadd.f32 0.0, %v1083
        %1085 = vdwg.mxu0
        %v1086 = vmul.f32 %v1084, 0.35355338
        %v1087 = vld [vmem:[%s696] sm:$0x1]
        %v1089 = vperm.slane %v1087, 0
        %v1091 = vadd.f32 %v1086, %v1089
        %v1092 = vsel %vm830, %v1091, -inf
        %1093 = vmax.xlane.f32.xlu0 %v1092
        %v1094 = vpop.xlane.xlu0 %1093
        %v1095 = vsub.f32 %v1091, %v1094
        %v1096 = vmul.f32 %v1095, 1.442695
        %v1097 = vpow.pop %v1096
        %v1098 = vsel %vm830, %v1097, 0.0
        %1099 = vadd.xlane.f32.xlu0 %v1098
        %v1100 = vpop.xlane.xlu0 %1099
        %v1101 = vrcp.pop %v1100
        %v1102 = vmul.f32 %v1097, %v1101
        %s1103 = scalar_lea.vmem %s693, 24 [#allocation16]
        %1104 = vst.msk [vmem:[%s1103] sm:$0xff] %vm830, %v1102
        %1105 = vrot.lane.b32.xlu0 %v828, 104
        %v1106 = vpop.permute.xlu0 %1105
        %v1109 = vsel %vm830, %v1102, 0
        %1111 = vmatpush.msra.mxu0 0.0
        %1112 = vmatpush.msra.mxu0 0.0
        %1113 = vmatpush.msra.mxu0 0.0
        %1114 = vmatpush.msra.mxu0 0.0
        %1115 = vmatpush.msra.mxu0 0.0
        %1116 = vmatpush.msra.mxu0 0.0
        %1117 = vmatpush.msra.mxu0 0.0
        %1118 = vmatpush.msra.mxu0 0.0
        %1119 = vmatpush.msra.mxu0 0.0
        %1120 = vmatpush.msra.mxu0 0.0
        %1121 = vmatpush.msra.mxu0 0.0
        %1122 = vmatpush.msra.mxu0 0.0
        %1123 = vmatpush.msra.mxu0 0.0
        %1124 = vmatpush.msra.mxu0 0.0
        %1125 = vmatpush.msra.mxu0 0.0
        %1126 = vmatpush.msra.mxu0 %v1106
        %1127 = vmatmul.f32.gmra.mxu0 %v1109
        %v1128 = vpop.f32.mrf.mxu0
        %v1129 = vadd.f32 0.0, %v1128
        %1130 = vdwg.mxu0
        %1132 = vrot.lane.b32.xlu0 %v1129, 24
        %v1133 = vpop.permute.xlu0 %1132
        %vm1135 = vcmask 261312
        %1136 = vst.msk [vmem:[#allocation2] sm:$0xff] %vm1135, %v1133
        %v1137 = vld [vmem:[#allocation2] sm:$0xff]
        %v1138 = vld [vmem:[#allocation14] sm:$0xff]
        %v1139 = vld [vmem:[#allocation14 + $0x8] sm:$0xff]
        %v1140 = vld [vmem:[#allocation14 + $0x10] sm:$0xff]
        %v1141 = vld [vmem:[#allocation14 + $0x18] sm:$0xff]
        %v1142 = vld [vmem:[%s11] sm:$0x1]
        %v1144 = vperm.slane %v1142, 0
        %v1147 = vsel %vm708, %v1137, 0
        %v1150 = vsel %vm708, %v1138, 0
        %v1153 = vsel %vm708, %v1139, 0
        %v1156 = vsel %vm708, %v1140, 0
        %v1159 = vsel %vm708, %v1141, 0
        %1161 = vmatpush.xpose.msra.mxu0 0.0
        %1162 = vmatpush.xpose.msra.mxu0 0.0
        %1163 = vmatpush.xpose.msra.mxu0 0.0
        %1164 = vmatpush.xpose.msra.mxu0 0.0
        %1165 = vmatpush.xpose.msra.mxu0 0.0
        %1166 = vmatpush.xpose.msra.mxu0 0.0
        %1167 = vmatpush.xpose.msra.mxu0 0.0
        %1168 = vmatpush.xpose.msra.mxu0 0.0
        %1169 = vmatpush.xpose.msra.mxu0 0.0
        %1170 = vmatpush.xpose.msra.mxu0 0.0
        %1171 = vmatpush.xpose.msra.mxu0 0.0
        %1172 = vmatpush.xpose.msra.mxu0 0.0
        %1173 = vmatpush.xpose.msra.mxu0 %v1159
        %1174 = vmatpush.xpose.msra.mxu0 %v1156
        %1175 = vmatpush.xpose.msra.mxu0 %v1153
        %1176 = vmatpush.xpose.msra.mxu0 %v1150
        %1177 = vmatmul.f32.gmra.mxu0 %v1147
        %v1178 = vpop.f32.mrf.mxu0
        %v1179 = vadd.f32 %v1144, %v1178
        %1180 = vdwg.mxu0
        %v1181 = vadd.f32 %v1179, %v697
        %v1182 = vsel %vm708, %v1181, 0.0
        %1183 = vadd.xlane.f32.xlu0 %v1182
        %v1184 = vpop.xlane.xlu0 %1183
        %v1185 = vrcp.pop 32.0
        %v1186 = vmul.f32 32.0, %v1185
        %v1187 = vsub.f32 1.0, %v1186
        %v1188 = vmul.f32 %v1185, %v1187
        %v1189 = vadd.f32 %v1185, %v1188
        %vm1190 = vweird.f32 %v1185
        %v1191 = vsel %vm1190, %v1185, %v1189
        %v1192 = vmul.f32 %v1184, %v1191
        %v1193 = vsub.f32 %v1181, %v1192
        %v1194 = vmul.f32 %v1193, %v1193
        %v1195 = vsel %vm708, %v1194, 0.0
        %1196 = vadd.xlane.f32.xlu0 %v1195
        %v1197 = vpop.xlane.xlu0 %1196
        %v1198 = vmul.f32 %v1197, %v1191
        %v1199 = vadd.f32 %v1198, 1e-12
        %v1200 = vrsqrt.pop %v1199
        %v1201 = vmul.f32 %v1200, %v1199
        %v1202 = vmul.f32 %v1201, %v1200
        %v1203 = vmul.f32 0.5, %v1202
        %v1204 = vsub.f32 1.5, %v1203
        %v1205 = vmul.f32 %v1200, %v1204
        %vm1206 = vweird.f32 %v1199
        %vm1207 = vweird.f32 %v1200
        %vm1208 = vmor %vm1206, %vm1207
        %v1209 = vsel %vm1208, %v1200, %v1205
        %v1210 = vmul.f32 %v1193, %v1209
        %v1211 = vld [vmem:[%s12] sm:$0x1]
        %v1213 = vperm.slane %v1211, 0
        %v1215 = vmul.f32 %v1210, %v1213
        %v1216 = vld [vmem:[%s13] sm:$0x1]
        %v1218 = vperm.slane %v1216, 0
        %v1220 = vadd.f32 %v1215, %v1218
        %1221 = vst.msk [vmem:[%s686] sm:$0xff] %vm708, %v1220
        %s1222 = sand.u32 %s379, 1
        %s1223 = scalar_lea.sflag [#allocation5], %s1222
        %s1224 = sand.u32 %s379, 1
        %s1225 = smul.addr %s1224, 8
        %s1226 = scalar_lea.vmem [#allocation15], %s1225
        %s1227 = sand.u32 %s407, 1
        %s1228 = scalar_lea.sflag [#allocation17], %s1227
        %s1229 = sand.u32 %s407, 1
        %s1230 = smul.addr %s1229, 32
        %s1231 = scalar_lea.vmem [#allocation16], %s1230
        // Predicated region
        $region105: #{tpu_custom_call.1} parent=75 // pred_check
          %p1232 = pneg %p389
        $region106: #{tpu_custom_call.1} parent=75 // pred_check_branch
          %1234 = sbr.rel (%p1232) target = $region108
        $region107: #{tpu_custom_call.1} parent=75 // pred_region
          %1236 = vsyncadd %s1223, 0
          %s1237 = sadd.s32 %s46, %s45
          %s1238 = smul.addr %s1237, 8
          %s1239 = scalar_lea.hbm %s14, %s1238
          %s1241 = sshll.u32 %s1226, 4
          %s1242 = int_to_ptr.vmem [resolvable:$true] %s1241
          %s1243 = sshll.u32 %s1239, 4
          %s1244 = int_to_ptr.hbm [resolvable:$true] %s1243
          %1246 = dma.vmem_to_hbm [thread:$0]  %s1242, 128, %s1244, %s1223
        $region108: #{tpu_custom_call.1} parent=75 // pred_fallthru
          _
        // Predicated region
        $region109: #{tpu_custom_call.1} parent=75 // pred_check
          %p1247 = pneg %p417
        $region110: #{tpu_custom_call.1} parent=75 // pred_check_branch
          %1249 = sbr.rel (%p1247) target = $region112
        $region111: #{tpu_custom_call.1} parent=75 // pred_region
          %1251 = vsyncadd %s1228, 0
          %s1252 = smul.addr %s45, 4
          %s1253 = sadd.s32 %s46, %s1252
          %s1254 = smul.addr %s1253, 8
          %s1255 = scalar_lea.hbm %s15, %s1254
          %s1256 = sshll.u32 %s1231, 4
          %s1257 = int_to_ptr.vmem [resolvable:$true] %s1256
          %s1258 = sshll.u32 %s1255, 4
          %s1259 = int_to_ptr.hbm [resolvable:$true] %s1258
          %1264 = dma.vmem_to_hbm [thread:$0]  %s1257, 512, %s1259, %s1228, 128, 128, 8
        $region112: #{tpu_custom_call.1} parent=75 // pred_fallthru
          _
      $region76: #{tpu_custom_call.1} parent=5 // pred_fallthru
        _
      %p1265 = scmp.le.s32.totalorder 2, %s36
      // Predicated region
      $region113: #{tpu_custom_call.1} parent=5 // pred_check
        %p1266 = pneg %p1265
      $region114: #{tpu_custom_call.1} parent=5 // pred_check_branch
        %1268 = sbr.rel (%p1266) target = $region116
      $region115: #{tpu_custom_call.1} parent=5 // pred_region
        %s1269 = ssub.s32 %s36, 2
        // Predicated region
        $region117: #{tpu_custom_call.1} parent=115 // pred_check
          %p1270 = pneg %p395
        $region118: #{tpu_custom_call.1} parent=115 // pred_check_branch
          %1272 = sbr.rel (%p1270) target = $region120
        $region119: #{tpu_custom_call.1} parent=115 // pred_region
          %s1273 = sand.u32 %s380, 1
          %s1274 = scalar_lea.sflag [#allocation5], %s1273
          %s1275 = sand.u32 %s380, 1
          %s1276 = smul.addr %s1275, 8
          %s1277 = scalar_lea.vmem [#allocation15], %s1276
          %1279 = dma.done %s1274, 128
        $region120: #{tpu_custom_call.1} parent=115 // pred_fallthru
          _
        // Predicated region
        $region121: #{tpu_custom_call.1} parent=115 // pred_check
          %p1280 = pneg %p423
        $region122: #{tpu_custom_call.1} parent=115 // pred_check_branch
          %1282 = sbr.rel (%p1280) target = $region124
        $region123: #{tpu_custom_call.1} parent=115 // pred_region
          %s1283 = sand.u32 %s408, 1
          %s1284 = scalar_lea.sflag [#allocation17], %s1283
          %s1285 = sand.u32 %s408, 1
          %s1286 = smul.addr %s1285, 32
          %s1287 = scalar_lea.vmem [#allocation16], %s1286
          %1289 = dma.done %s1284, 512
        $region124: #{tpu_custom_call.1} parent=115 // pred_fallthru
          _
      $region116: #{tpu_custom_call.1} parent=5 // pred_fallthru
        _
    $region6: #{tpu_custom_call.1} parent=1 // loop_footer
      %s40 = sadd.s32 1, %s36
    $region7: #{tpu_custom_call.1} parent=1 // loop_footer_branch
      %35 = sbr.rel target = $region3
    $region8: #{tpu_custom_call.1} parent=1 // loop_exit
      _
    %1290 = vsyncpa [#allocation4], 1
    %s1291 = scalar_lea.sflag [#allocation4], 1
    %1292 = vsyncpa %s1291, 1
    %1293 = vsyncpa [#allocation7], 1
    %s1294 = scalar_lea.sflag [#allocation7], 1
    %1295 = vsyncpa %s1294, 1
    %1296 = vsyncpa [#allocation10], 1
    %1297 = vsyncpa [#allocation13], 1
    %1298 = vsyncpa [#allocation5], 1
    %s1299 = scalar_lea.sflag [#allocation5], 1
    %1300 = vsyncpa %s1299, 1
    %1301 = vsyncpa [#allocation17], 1
    %s1302 = scalar_lea.sflag [#allocation17], 1
    %1303 = vsyncpa %s1302, 1

</llo_original>
